<compile_context>
chip_gen: v6e
topology: v6e:2x2x1
jax: 0.10.0
libtpu: 0.0.40
codegen_flags: <defaults>
</compile_context>

<pallas_src>
import functools
import math

import jax
import jax.numpy as jnp
from jax.experimental import pallas as pl
from jax.experimental.pallas import tpu as pltpu

# ----- small, module-consistent hyper-parameters -----------------------------
CODEBOOK_SIZE = 64                 # K
CODEBOOK_DIM = 32                  # D (== encoder_dim)
NUM_QUANTIZERS = 4                 # Q
ENCODER_DIMS = (CODEBOOK_DIM // 4, CODEBOOK_DIM // 2, CODEBOOK_DIM)
LEVEL = 0                          # hierarchical level used in forward()


# ----- exact (erf-based) GELU, matching torch.nn.GELU() at f32 precision -----
def _erf_f32(x):
    # XLA-style float32 erf: erf(x) = x * P(x^2) / Q(x^2), x clamped to [-4, 4]
    alpha = (-2.72614225801306e-10, 2.77068142495902e-08, -2.10102402082508e-06,
             -5.69250639462346e-05, -7.34990630326855e-04, -2.954600054904e-03,
             -1.60960333262415e-02)
    beta = (-1.45660718464996e-05, -2.13374055278905e-04, -1.68282697438203e-03,
            -7.37332916720468e-03, -1.42647390514189e-02)
    x = jnp.clip(x, -4.0, 4.0)
    x2 = x * x
    p = jnp.full_like(x, alpha[0])
    for a in alpha[1:]:
        p = p * x2 + a
    q = jnp.full_like(x, beta[0])
    for b in beta[1:]:
        q = q * x2 + b
    return x * p * pl.reciprocal(q)          # divide -> EUP reciprocal


def _gelu_exact(x):
    return 0.5 * x * (1.0 + _erf_f32(x * (1.0 / math.sqrt(2.0))))


# ----- fused kernel: weight-net + Q-way VQ + weighted combine + loss ----------
def fused_vq_kernel(x_ref, wp_ref, w1_ref, w2_ref, b2_ref, a_ref, cbt_ref,
                    quant_ref, codes_ref, weights_ref, loss_ref, *, t_valid):
    D, QK = cbt_ref.shape
    Q = w2_ref.shape[0]
    K = QK // Q
    Tt = x_ref.shape[-1]

    x = x_ref[...]                                           # (Cin+1, Tt); last row == 1

    # weight_network (its first conv pre-folded with the input projection):
    #   h = [W1@Wp | W1@bp+b1] @ [x;1] -> GELU -> Conv1d(D//4, Q) -> softmax(Q)
    h = _gelu_exact(jnp.dot(w1_ref[...], x, preferred_element_type=jnp.float32))
    logits = jnp.dot(w2_ref[...], h, preferred_element_type=jnp.float32) + b2_ref[...]
    logits = logits - jnp.max(logits, axis=0, keepdims=True)
    e = jnp.exp(logits)
    w_sm = e * pl.reciprocal(jnp.sum(e, axis=0, keepdims=True))     # (Q, Tt)
    weights_ref[...] = w_sm
    wmax = jnp.max(w_sm, axis=0, keepdims=True)                     # (1, Tt)

    # ||xproj||^2 per column (needed only by the loss identity)
    xproj = jnp.dot(wp_ref[...], x, preferred_element_type=jnp.float32)   # (D, Tt)
    xnorm2 = jnp.sum(xproj * xproj, axis=0, keepdims=True)                # (1, Tt)

    # stacked nearest-codebook search: ONE MXU pass for all Q codebooks with the
    # -2 scale and ||c||^2 bias folded in:  score = 2<c, xproj> - ||c||^2
    # (argmax score == argmin true distance; the matmul reads x directly).
    score = jnp.dot(a_ref[...], x, preferred_element_type=jnp.float32)    # (Q*K, Tt)

    row = jax.lax.broadcasted_iota(jnp.int32, (K, Tt), 0)
    codes_acc = jnp.zeros((1, Tt), jnp.int32)
    smax_sum = jnp.zeros((1, Tt), jnp.float32)
    woh_parts = []
    for q in range(Q):                                        # static unroll (Q == 4)
        sc_q = score[q * K:(q + 1) * K, :]                                  # (K, Tt)
        smax_q = jnp.max(sc_q, axis=0, keepdims=True)                       # (1, Tt)
        codes_q = jnp.min(jnp.where(sc_q == smax_q, row, K),
                          axis=0, keepdims=True).astype(jnp.int32)          # first argmax
        w_q = w_sm[q:q + 1, :]
        woh_parts.append(jnp.where(row == codes_q, w_q, 0.0))               # weighted one-hot
        smax_sum = smax_sum + smax_q
        # masked code assignment; later q overwrites on weight ties (== PyTorch loop)
        codes_acc = jnp.where(w_q == wmax, codes_q, codes_acc)

    # gather + weighted combine of ALL quantizers as one 256-deep matmul
    woh = jnp.concatenate(woh_parts, axis=0)                                # (Q*K, Tt)
    quant_ref[...] = jnp.dot(cbt_ref[...], woh, preferred_element_type=jnp.float32)
    codes_ref[...] = codes_acc

    # loss partial: sum_q ||quant_q - xproj||^2 = Q*||xproj||^2 - sum_q max_score
    # (padded tail columns masked out); store a lane-dense per-tile scalar.
    col = jax.lax.broadcasted_iota(jnp.int32, (1, Tt), 1) + pl.program_id(1) * Tt
    sse_col = jnp.where(col < t_valid, float(Q) * xnorm2 - smax_sum, 0.0)
    loss_ref[...] = jnp.broadcast_to(jnp.sum(sse_col, axis=1, keepdims=True), (1, 128))


# ----- tiling helper ----------------------------------------------------------
def _choose_tiling(B, T):
    """Pad T to a 128-multiple; pick the largest lane-dense tile that keeps the
    grid >= 2 steps (so both v7x TensorCores get work)."""
    t_pad = ((T + 127) // 128) * 128
    for cand in (2048, 1024, 512, 256, 128):
        if t_pad % cand == 0 and B * (t_pad // cand) >= 2:
            return cand, t_pad
    return 128, t_pad


# ----- forward wrapper --------------------------------------------------------
def music_vq_forward(x, params):
    """x: [B, encoder_dims[LEVEL], T] float32 (PyTorch NCT layout)."""
    B, Cin, T = x.shape
    D, Q, K = CODEBOOK_DIM, NUM_QUANTIZERS, CODEBOOK_SIZE

    # ---- trace-time folding of the tiny dense layers --------------------------
    wp, bp = params['wp'], params['bp']                    # (D, Cin), (D, 1)
    w1, b1 = params['w1'], params['b1']                    # (D//4, D), (D//4, 1)
    cb_all = params['codebooks'].reshape(Q * K, D)         # (Q*K, D)
    c2 = jnp.sum(cb_all * cb_all, axis=1, keepdims=True)   # (Q*K, 1)

    wp_aug = jnp.concatenate([wp, bp], axis=1)                          # (D, Cin+1)
    w1p_aug = jnp.concatenate([w1 @ wp, w1 @ bp + b1], axis=1)          # (D//4, Cin+1)
    a_aug = jnp.concatenate([2.0 * (cb_all @ wp),
                             2.0 * (cb_all @ bp) - c2], axis=1)         # (Q*K, Cin+1)
    cbt = cb_all.T                                                      # (D, Q*K)

    # ---- lane-dense tiling with padding for arbitrary T -----------------------
    TILE_T, T_pad = _choose_tiling(B, T)
    nT = T_pad // TILE_T
    x_aug = jnp.concatenate(
        [jnp.pad(x, ((0, 0), (0, 0), (0, T_pad - T))),
         jnp.ones((B, 1, T_pad), x.dtype)], axis=1)                     # (B, Cin+1, T_pad)

    kernel = functools.partial(fused_vq_kernel, t_valid=T)

    def const(shape):
        zeros = (0,) * len(shape)
        return pl.BlockSpec(shape, lambda b, t, z=zeros: z)

    quant, codes3, weights, loss_part = pl.pallas_call(
        kernel,
        grid=(B, nT),
        in_specs=[
            pl.BlockSpec((None, Cin + 1, TILE_T), lambda b, t: (b, 0, t)),   # x (streamed)
            const((D, Cin + 1)),                                             # [Wp | bp]
            const((D // 4, Cin + 1)),                                        # [W1@Wp | W1@bp+b1]
            const((Q, D // 4)), const((Q, 1)),                               # W2, b2
            const((Q * K, Cin + 1)),                                         # [2cbWp | 2cbbp - c2]
            const((D, Q * K)),                                               # codebooks^T
        ],
        out_specs=[
            pl.BlockSpec((None, D, TILE_T), lambda b, t: (b, 0, t)),         # quantized
            pl.BlockSpec((None, 1, TILE_T), lambda b, t: (b, 0, t)),         # codes
            pl.BlockSpec((None, Q, TILE_T), lambda b, t: (b, 0, t)),         # weights
            pl.BlockSpec((None, None, 1, 128), lambda b, t: (b, t, 0, 0)),   # loss partials
        ],
        out_shape=(
            jax.ShapeDtypeStruct((B, D, T_pad), jnp.float32),
            jax.ShapeDtypeStruct((B, 1, T_pad), jnp.int32),
            jax.ShapeDtypeStruct((B, Q, T_pad), jnp.float32),
            jax.ShapeDtypeStruct((B, nT, 1, 128), jnp.float32),
        ),
        compiler_params=pltpu.CompilerParams(
            dimension_semantics=("parallel", "parallel")),
    )(x_aug, wp_aug, w1p_aug, params['w2'], params['b2'], a_aug, cbt)

    quantized = quant[:, :, :T]
    codes = codes3[:, 0, :T]                                         # [B, T] int32
    weights = weights[:, :, :T]
    # mean over quantizers of per-quantizer MSE (== total_loss / num_quantizers)
    mse = jnp.sum(loss_part[..., 0]) / (B * T * D * Q)

    # TODO(synk): training-only EMA codebook update (_update_codebook) and the
    # per-sub-quantizer perplexity/usage buffers are stateful and not reproduced.
    return {'quantized': quantized, 'codes': codes,
            'commitment_loss': mse, 'codebook_loss': mse, 'weights': weights}


# ----- deterministic parameter init -------------------------------------------
def init_params(key):
    D, K, Q = CODEBOOK_DIM, CODEBOOK_SIZE, NUM_QUANTIZERS
    Cin = ENCODER_DIMS[min(LEVEL, len(ENCODER_DIMS) - 1)]
    ks = jax.random.split(key, 7)

    wp = 0.1 * jax.random.normal(ks[0], (D, Cin), jnp.float32)       # Conv1d(Cin, D, 1)
    bp = 0.1 * jax.random.normal(ks[1], (D, 1), jnp.float32)
    w1 = 0.1 * jax.random.normal(ks[2], (D // 4, D), jnp.float32)    # Conv1d(D, D//4, 1)
    b1 = 0.1 * jax.random.normal(ks[3], (D // 4, 1), jnp.float32)
    w2 = 0.1 * jax.random.normal(ks[4], (Q, D // 4), jnp.float32)    # Conv1d(D//4, Q, 1)
    b2 = 0.1 * jax.random.normal(ks[5], (Q, 1), jnp.float32)

    # codebooks: normal(std=0.02), first min(32, K) rows = sin patterns
    # (mirrors MusicVectorQuantizer._initialize_codebooks)
    n_pat = min(32, K)
    freq = (jnp.arange(n_pat, dtype=jnp.float32) + 1.0) * 0.1
    pattern = jnp.sin(jnp.arange(D, dtype=jnp.float32)[None, :] * freq[:, None]) * 0.1
    cb_keys = jax.random.split(ks[6], Q)
    cbs = []
    for qi in range(Q):
        cb = 0.02 * jax.random.normal(cb_keys[qi], (K, D), jnp.float32)
        cb = cb.at[:n_pat].set(pattern)
        cbs.append(cb)
    codebooks = jnp.stack(cbs, axis=0)                               # (Q, K, D)

    return {'wp': wp, 'bp': bp, 'w1': w1, 'b1': b1, 'w2': w2, 'b2': b2,
            'codebooks': codebooks}


if __name__ == "__main__":
    key = jax.random.PRNGKey(0)
    pkey, xkey = jax.random.split(key)
    params = init_params(pkey)

    B, T = 2, 16
    Cin = ENCODER_DIMS[min(LEVEL, len(ENCODER_DIMS) - 1)]
    x = jax.random.normal(xkey, (B, Cin, T), jnp.float32)            # [B, dim, time]

    out = jax.jit(music_vq_forward)(x, params)
    out = jax.tree_util.tree_map(jax.block_until_ready, out)
    print("KERNEL_OK")
</pallas_src>

<mosaic_0001>
module attributes {stable_mosaic.version = 11 : i64} {
  func.func @fused_vq_kernel(%arg0: i32, %arg1: i32, %arg2: memref<1x9x128xf32, #tpu.memory_space<vmem>>, %arg3: memref<32x9xf32, #tpu.memory_space<vmem>>, %arg4: memref<8x9xf32, #tpu.memory_space<vmem>>, %arg5: memref<4x8xf32, #tpu.memory_space<vmem>>, %arg6: memref<4x1xf32, #tpu.memory_space<vmem>>, %arg7: memref<256x9xf32, #tpu.memory_space<vmem>>, %arg8: memref<32x256xf32, #tpu.memory_space<vmem>>, %arg9: memref<1x32x128xf32, #tpu.memory_space<vmem>>, %arg10: memref<1x1x128xi32, #tpu.memory_space<vmem>>, %arg11: memref<1x4x128xf32, #tpu.memory_space<vmem>>, %arg12: memref<1x1x1x128xf32, #tpu.memory_space<vmem>>) attributes {dimension_semantics = [#tpu.dimension_semantics<parallel>, #tpu.dimension_semantics<parallel>], iteration_bounds = array<i64: 2, 1>, scalar_prefetch = 0 : i64, scratch_operands = 0 : i64, tpu.core_type = #tpu.core_type<tc>, window_params = [{transform_indices = @transform_0, window_bounds = array<i64: 1, 9, 128>}, {pipeline_mode = #tpu.pipeline_mode<synchronous>, transform_indices = @transform_1, window_bounds = array<i64: 32, 9>}, {pipeline_mode = #tpu.pipeline_mode<synchronous>, transform_indices = @transform_2, window_bounds = array<i64: 8, 9>}, {pipeline_mode = #tpu.pipeline_mode<synchronous>, transform_indices = @transform_3, window_bounds = array<i64: 4, 8>}, {pipeline_mode = #tpu.pipeline_mode<synchronous>, transform_indices = @transform_4, window_bounds = array<i64: 4, 1>}, {pipeline_mode = #tpu.pipeline_mode<synchronous>, transform_indices = @transform_5, window_bounds = array<i64: 256, 9>}, {pipeline_mode = #tpu.pipeline_mode<synchronous>, transform_indices = @transform_6, window_bounds = array<i64: 32, 256>}, {transform_indices = @transform_7, window_bounds = array<i64: 1, 32, 128>}, {transform_indices = @transform_8, window_bounds = array<i64: 1, 1, 128>}, {transform_indices = @transform_9, window_bounds = array<i64: 1, 4, 128>}, {transform_indices = @transform_10, window_bounds = array<i64: 1, 1, 1, 128>}]} {
    %c0 = arith.constant 0 : index
    %c0_0 = arith.constant 0 : index
    %c0_1 = arith.constant 0 : index
    %0 = vector.load %arg2[%c0, %c0_0, %c0_1] : memref<1x9x128xf32, #tpu.memory_space<vmem>>, vector<1x9x128xf32>
    %1 = vector.shape_cast %0 : vector<1x9x128xf32> to vector<9x128xf32>
    %c0_2 = arith.constant 0 : index
    %c0_3 = arith.constant 0 : index
    %2 = vector.load %arg4[%c0_2, %c0_3] : memref<8x9xf32, #tpu.memory_space<vmem>>, vector<8x9xf32>
    %cst = arith.constant dense<0.000000e+00> : vector<8x128xf32>
    %3 = tpu.matmul %2, %1, %cst {dimension_numbers = #tpu.dot_dimension_numbers<[1], [0], [0], [1], [0, 0, 1, 1], [], []>} : vector<8x9xf32>, vector<9x128xf32>, vector<8x128xf32> -> vector<8x128xf32>
    %cst_4 = arith.constant 5.000000e-01 : f32
    %4 = vector.broadcast %cst_4 : f32 to vector<8x128xf32>
    %5 = arith.mulf %4, %3 : vector<8x128xf32>
    %cst_5 = arith.constant 0.707106769 : f32
    %6 = vector.broadcast %cst_5 : f32 to vector<8x128xf32>
    %7 = arith.mulf %3, %6 : vector<8x128xf32>
    %cst_6 = arith.constant -4.000000e+00 : f32
    %cst_7 = arith.constant 4.000000e+00 : f32
    %8 = vector.broadcast %cst_6 : f32 to vector<8x128xf32>
    %9 = arith.maximumf %8, %7 : vector<8x128xf32>
    %10 = vector.broadcast %cst_7 : f32 to vector<8x128xf32>
    %11 = arith.minimumf %10, %9 : vector<8x128xf32>
    %12 = arith.mulf %11, %11 : vector<8x128xf32>
    %cst_8 = arith.constant -2.72614237E-10 : f32
    %13 = vector.broadcast %cst_8 : f32 to vector<8x128xf32>
    %14 = arith.mulf %13, %12 : vector<8x128xf32>
    %cst_9 = arith.constant 2.77068146E-8 : f32
    %15 = vector.broadcast %cst_9 : f32 to vector<8x128xf32>
    %16 = arith.addf %14, %15 : vector<8x128xf32>
    %17 = arith.mulf %16, %12 : vector<8x128xf32>
    %cst_10 = arith.constant -2.10102394E-6 : f32
    %18 = vector.broadcast %cst_10 : f32 to vector<8x128xf32>
    %19 = arith.addf %17, %18 : vector<8x128xf32>
    %20 = arith.mulf %19, %12 : vector<8x128xf32>
    %cst_11 = arith.constant -5.69250624E-5 : f32
    %21 = vector.broadcast %cst_11 : f32 to vector<8x128xf32>
    %22 = arith.addf %20, %21 : vector<8x128xf32>
    %23 = arith.mulf %22, %12 : vector<8x128xf32>
    %cst_12 = arith.constant -7.34990637E-4 : f32
    %24 = vector.broadcast %cst_12 : f32 to vector<8x128xf32>
    %25 = arith.addf %23, %24 : vector<8x128xf32>
    %26 = arith.mulf %25, %12 : vector<8x128xf32>
    %cst_13 = arith.constant -0.00295460015 : f32
    %27 = vector.broadcast %cst_13 : f32 to vector<8x128xf32>
    %28 = arith.addf %26, %27 : vector<8x128xf32>
    %29 = arith.mulf %28, %12 : vector<8x128xf32>
    %cst_14 = arith.constant -0.0160960332 : f32
    %30 = vector.broadcast %cst_14 : f32 to vector<8x128xf32>
    %31 = arith.addf %29, %30 : vector<8x128xf32>
    %cst_15 = arith.constant -1.45660715E-5 : f32
    %32 = vector.broadcast %cst_15 : f32 to vector<8x128xf32>
    %33 = arith.mulf %32, %12 : vector<8x128xf32>
    %cst_16 = arith.constant -2.13374049E-4 : f32
    %34 = vector.broadcast %cst_16 : f32 to vector<8x128xf32>
    %35 = arith.addf %33, %34 : vector<8x128xf32>
    %36 = arith.mulf %35, %12 : vector<8x128xf32>
    %cst_17 = arith.constant -0.00168282702 : f32
    %37 = vector.broadcast %cst_17 : f32 to vector<8x128xf32>
    %38 = arith.addf %36, %37 : vector<8x128xf32>
    %39 = arith.mulf %38, %12 : vector<8x128xf32>
    %cst_18 = arith.constant -0.00737332925 : f32
    %40 = vector.broadcast %cst_18 : f32 to vector<8x128xf32>
    %41 = arith.addf %39, %40 : vector<8x128xf32>
    %42 = arith.mulf %41, %12 : vector<8x128xf32>
    %cst_19 = arith.constant -0.0142647391 : f32
    %43 = vector.broadcast %cst_19 : f32 to vector<8x128xf32>
    %44 = arith.addf %42, %43 : vector<8x128xf32>
    %45 = arith.mulf %11, %31 : vector<8x128xf32>
    %46 = tpu.reciprocal %44 : vector<8x128xf32> -> vector<8x128xf32>
    %47 = arith.mulf %45, %46 : vector<8x128xf32>
    %cst_20 = arith.constant 1.000000e+00 : f32
    %48 = vector.broadcast %cst_20 : f32 to vector<8x128xf32>
    %49 = arith.addf %48, %47 : vector<8x128xf32>
    %50 = arith.mulf %5, %49 : vector<8x128xf32>
    %c0_21 = arith.constant 0 : index
    %c0_22 = arith.constant 0 : index
    %51 = vector.load %arg5[%c0_21, %c0_22] : memref<4x8xf32, #tpu.memory_space<vmem>>, vector<4x8xf32>
    %cst_23 = arith.constant dense<0.000000e+00> : vector<4x128xf32>
    %52 = tpu.matmul %51, %50, %cst_23 {dimension_numbers = #tpu.dot_dimension_numbers<[1], [0], [0], [1], [0, 0, 1, 1], [], []>} : vector<4x8xf32>, vector<8x128xf32>, vector<4x128xf32> -> vector<4x128xf32>
    %c0_24 = arith.constant 0 : index
    %c0_25 = arith.constant 0 : index
    %53 = vector.load %arg6[%c0_24, %c0_25] : memref<4x1xf32, #tpu.memory_space<vmem>>, vector<4x1xf32>
    %54 = vector.broadcast %53 : vector<4x1xf32> to vector<4x128xf32>
    %55 = arith.addf %52, %54 : vector<4x128xf32>
    %cst_26 = arith.constant dense<0xFF800000> : vector<128xf32>
    %56 = vector.multi_reduction <maximumf>, %55, %cst_26 [0] : vector<4x128xf32> to vector<128xf32>
    %57 = vector.shape_cast %56 : vector<128xf32> to vector<1x128xf32>
    %58 = vector.broadcast %57 : vector<1x128xf32> to vector<4x128xf32>
    %59 = arith.subf %55, %58 : vector<4x128xf32>
    %60 = math.exp %59 : vector<4x128xf32>
    %cst_27 = arith.constant dense<0.000000e+00> : vector<128xf32>
    %61 = vector.multi_reduction <add>, %60, %cst_27 [0] : vector<4x128xf32> to vector<128xf32>
    %62 = vector.shape_cast %61 : vector<128xf32> to vector<1x128xf32>
    %63 = tpu.reciprocal %62 : vector<1x128xf32> -> vector<1x128xf32>
    %64 = vector.broadcast %63 : vector<1x128xf32> to vector<4x128xf32>
    %65 = arith.mulf %60, %64 : vector<4x128xf32>
    %c0_28 = arith.constant 0 : index
    %c0_29 = arith.constant 0 : index
    %c0_30 = arith.constant 0 : index
    %66 = vector.load %arg11[%c0_28, %c0_29, %c0_30] : memref<1x4x128xf32, #tpu.memory_space<vmem>>, vector<1x4x128xf32>
    %67 = vector.shape_cast %66 : vector<1x4x128xf32> to vector<4x128xf32>
    %68 = vector.shape_cast %65 : vector<4x128xf32> to vector<1x4x128xf32>
    tpu.vector_store %arg11[%c0_28, %c0_29, %c0_30], %68 {strides = array<i32>} : memref<1x4x128xf32, #tpu.memory_space<vmem>>, vector<1x4x128xf32>,
    %cst_31 = arith.constant dense<0xFF800000> : vector<128xf32>
    %69 = vector.multi_reduction <maximumf>, %65, %cst_31 [0] : vector<4x128xf32> to vector<128xf32>
    %70 = vector.shape_cast %69 : vector<128xf32> to vector<1x128xf32>
    %c0_32 = arith.constant 0 : index
    %c0_33 = arith.constant 0 : index
    %71 = vector.load %arg3[%c0_32, %c0_33] : memref<32x9xf32, #tpu.memory_space<vmem>>, vector<32x9xf32>
    %cst_34 = arith.constant dense<0.000000e+00> : vector<32x128xf32>
    %72 = tpu.matmul %71, %1, %cst_34 {dimension_numbers = #tpu.dot_dimension_numbers<[1], [0], [0], [1], [0, 0, 1, 1], [], []>} : vector<32x9xf32>, vector<9x128xf32>, vector<32x128xf32> -> vector<32x128xf32>
    %73 = arith.mulf %72, %72 : vector<32x128xf32>
    %cst_35 = arith.constant dense<0.000000e+00> : vector<128xf32>
    %74 = vector.multi_reduction <add>, %73, %cst_35 [0] : vector<32x128xf32> to vector<128xf32>
    %75 = vector.shape_cast %74 : vector<128xf32> to vector<1x128xf32>
    %c0_36 = arith.constant 0 : index
    %c0_37 = arith.constant 0 : index
    %76 = vector.load %arg7[%c0_36, %c0_37] : memref<256x9xf32, #tpu.memory_space<vmem>>, vector<256x9xf32>
    %cst_38 = arith.constant dense<0.000000e+00> : vector<256x128xf32>
    %77 = tpu.matmul %76, %1, %cst_38 {dimension_numbers = #tpu.dot_dimension_numbers<[1], [0], [0], [1], [0, 0, 1, 1], [], []>} : vector<256x9xf32>, vector<9x128xf32>, vector<256x128xf32> -> vector<256x128xf32>
    %78 = tpu.iota {dimensions = array<i32: 0>} : vector<64x128xi32>
    %c0_i32 = arith.constant 0 : i32
    %79 = vector.broadcast %c0_i32 : i32 to vector<1x128xi32>
    %cst_39 = arith.constant 0.000000e+00 : f32
    %80 = vector.broadcast %cst_39 : f32 to vector<1x128xf32>
    %81 = vector.extract_strided_slice %77 {offsets = [0, 0], sizes = [64, 128], strides = [1, 1]} : vector<256x128xf32> to vector<64x128xf32>
    %cst_40 = arith.constant dense<0xFF800000> : vector<128xf32>
    %82 = vector.multi_reduction <maximumf>, %81, %cst_40 [0] : vector<64x128xf32> to vector<128xf32>
    %83 = vector.shape_cast %82 : vector<128xf32> to vector<1x128xf32>
    %84 = vector.broadcast %83 : vector<1x128xf32> to vector<64x128xf32>
    %85 = arith.cmpf oeq, %81, %84 : vector<64x128xf32>
    %c64_i32 = arith.constant 64 : i32
    %86 = vector.broadcast %c64_i32 : i32 to vector<64x128xi32>
    %87 = arith.select %85, %78, %86 : vector<64x128xi1>, vector<64x128xi32>
    %cst_41 = arith.constant dense<2147483647> : vector<128xi32>
    %88 = vector.multi_reduction <minsi>, %87, %cst_41 [0] : vector<64x128xi32> to vector<128xi32>
    %89 = vector.shape_cast %88 : vector<128xi32> to vector<1x128xi32>
    %90 = vector.extract_strided_slice %65 {offsets = [0, 0], sizes = [1, 128], strides = [1, 1]} : vector<4x128xf32> to vector<1x128xf32>
    %91 = vector.broadcast %89 : vector<1x128xi32> to vector<64x128xi32>
    %92 = arith.cmpi eq, %78, %91 : vector<64x128xi32>
    %cst_42 = arith.constant 0.000000e+00 : f32
    %93 = vector.shape_cast %90 : vector<1x128xf32> to vector<1x128xf32>
    %94 = vector.broadcast %93 : vector<1x128xf32> to vector<64x128xf32>
    %95 = vector.broadcast %cst_42 : f32 to vector<64x128xf32>
    %96 = arith.select %92, %94, %95 : vector<64x128xi1>, vector<64x128xf32>
    %97 = arith.addf %80, %83 : vector<1x128xf32>
    %98 = arith.cmpf oeq, %90, %70 : vector<1x128xf32>
    %99 = arith.select %98, %89, %79 : vector<1x128xi1>, vector<1x128xi32>
    %100 = vector.extract_strided_slice %77 {offsets = [64, 0], sizes = [64, 128], strides = [1, 1]} : vector<256x128xf32> to vector<64x128xf32>
    %cst_43 = arith.constant dense<0xFF800000> : vector<128xf32>
    %101 = vector.multi_reduction <maximumf>, %100, %cst_43 [0] : vector<64x128xf32> to vector<128xf32>
    %102 = vector.shape_cast %101 : vector<128xf32> to vector<1x128xf32>
    %103 = vector.broadcast %102 : vector<1x128xf32> to vector<64x128xf32>
    %104 = arith.cmpf oeq, %100, %103 : vector<64x128xf32>
    %c64_i32_44 = arith.constant 64 : i32
    %105 = vector.broadcast %c64_i32_44 : i32 to vector<64x128xi32>
    %106 = arith.select %104, %78, %105 : vector<64x128xi1>, vector<64x128xi32>
    %cst_45 = arith.constant dense<2147483647> : vector<128xi32>
    %107 = vector.multi_reduction <minsi>, %106, %cst_45 [0] : vector<64x128xi32> to vector<128xi32>
    %108 = vector.shape_cast %107 : vector<128xi32> to vector<1x128xi32>
    %109 = vector.extract_strided_slice %65 {offsets = [1, 0], sizes = [1, 128], strides = [1, 1]} : vector<4x128xf32> to vector<1x128xf32>
    %110 = vector.broadcast %108 : vector<1x128xi32> to vector<64x128xi32>
    %111 = arith.cmpi eq, %78, %110 : vector<64x128xi32>
    %cst_46 = arith.constant 0.000000e+00 : f32
    %112 = vector.shape_cast %109 : vector<1x128xf32> to vector<1x128xf32>
    %113 = vector.broadcast %112 : vector<1x128xf32> to vector<64x128xf32>
    %114 = vector.broadcast %cst_46 : f32 to vector<64x128xf32>
    %115 = arith.select %111, %113, %114 : vector<64x128xi1>, vector<64x128xf32>
    %116 = arith.addf %97, %102 : vector<1x128xf32>
    %117 = arith.cmpf oeq, %109, %70 : vector<1x128xf32>
    %118 = arith.select %117, %108, %99 : vector<1x128xi1>, vector<1x128xi32>
    %119 = vector.extract_strided_slice %77 {offsets = [128, 0], sizes = [64, 128], strides = [1, 1]} : vector<256x128xf32> to vector<64x128xf32>
    %cst_47 = arith.constant dense<0xFF800000> : vector<128xf32>
    %120 = vector.multi_reduction <maximumf>, %119, %cst_47 [0] : vector<64x128xf32> to vector<128xf32>
    %121 = vector.shape_cast %120 : vector<128xf32> to vector<1x128xf32>
    %122 = vector.broadcast %121 : vector<1x128xf32> to vector<64x128xf32>
    %123 = arith.cmpf oeq, %119, %122 : vector<64x128xf32>
    %c64_i32_48 = arith.constant 64 : i32
    %124 = vector.broadcast %c64_i32_48 : i32 to vector<64x128xi32>
    %125 = arith.select %123, %78, %124 : vector<64x128xi1>, vector<64x128xi32>
    %cst_49 = arith.constant dense<2147483647> : vector<128xi32>
    %126 = vector.multi_reduction <minsi>, %125, %cst_49 [0] : vector<64x128xi32> to vector<128xi32>
    %127 = vector.shape_cast %126 : vector<128xi32> to vector<1x128xi32>
    %128 = vector.extract_strided_slice %65 {offsets = [2, 0], sizes = [1, 128], strides = [1, 1]} : vector<4x128xf32> to vector<1x128xf32>
    %129 = vector.broadcast %127 : vector<1x128xi32> to vector<64x128xi32>
    %130 = arith.cmpi eq, %78, %129 : vector<64x128xi32>
    %cst_50 = arith.constant 0.000000e+00 : f32
    %131 = vector.shape_cast %128 : vector<1x128xf32> to vector<1x128xf32>
    %132 = vector.broadcast %131 : vector<1x128xf32> to vector<64x128xf32>
    %133 = vector.broadcast %cst_50 : f32 to vector<64x128xf32>
    %134 = arith.select %130, %132, %133 : vector<64x128xi1>, vector<64x128xf32>
    %135 = arith.addf %116, %121 : vector<1x128xf32>
    %136 = arith.cmpf oeq, %128, %70 : vector<1x128xf32>
    %137 = arith.select %136, %127, %118 : vector<1x128xi1>, vector<1x128xi32>
    %138 = vector.extract_strided_slice %77 {offsets = [192, 0], sizes = [64, 128], strides = [1, 1]} : vector<256x128xf32> to vector<64x128xf32>
    %cst_51 = arith.constant dense<0xFF800000> : vector<128xf32>
    %139 = vector.multi_reduction <maximumf>, %138, %cst_51 [0] : vector<64x128xf32> to vector<128xf32>
    %140 = vector.shape_cast %139 : vector<128xf32> to vector<1x128xf32>
    %141 = vector.broadcast %140 : vector<1x128xf32> to vector<64x128xf32>
    %142 = arith.cmpf oeq, %138, %141 : vector<64x128xf32>
    %c64_i32_52 = arith.constant 64 : i32
    %143 = vector.broadcast %c64_i32_52 : i32 to vector<64x128xi32>
    %144 = arith.select %142, %78, %143 : vector<64x128xi1>, vector<64x128xi32>
    %cst_53 = arith.constant dense<2147483647> : vector<128xi32>
    %145 = vector.multi_reduction <minsi>, %144, %cst_53 [0] : vector<64x128xi32> to vector<128xi32>
    %146 = vector.shape_cast %145 : vector<128xi32> to vector<1x128xi32>
    %147 = vector.extract_strided_slice %65 {offsets = [3, 0], sizes = [1, 128], strides = [1, 1]} : vector<4x128xf32> to vector<1x128xf32>
    %148 = vector.broadcast %146 : vector<1x128xi32> to vector<64x128xi32>
    %149 = arith.cmpi eq, %78, %148 : vector<64x128xi32>
    %cst_54 = arith.constant 0.000000e+00 : f32
    %150 = vector.shape_cast %147 : vector<1x128xf32> to vector<1x128xf32>
    %151 = vector.broadcast %150 : vector<1x128xf32> to vector<64x128xf32>
    %152 = vector.broadcast %cst_54 : f32 to vector<64x128xf32>
    %153 = arith.select %149, %151, %152 : vector<64x128xi1>, vector<64x128xf32>
    %154 = arith.addf %135, %140 : vector<1x128xf32>
    %155 = arith.cmpf oeq, %147, %70 : vector<1x128xf32>
    %156 = arith.select %155, %146, %137 : vector<1x128xi1>, vector<1x128xi32>
    %157 = tpu.concatenate %96, %115, %134, %153 in 0 : vector<64x128xf32>, vector<64x128xf32>, vector<64x128xf32>, vector<64x128xf32> -> vector<256x128xf32>
    %c0_55 = arith.constant 0 : index
    %c0_56 = arith.constant 0 : index
    %158 = vector.load %arg8[%c0_55, %c0_56] : memref<32x256xf32, #tpu.memory_space<vmem>>, vector<32x256xf32>
    %cst_57 = arith.constant dense<0.000000e+00> : vector<32x128xf32>
    %159 = tpu.matmul %158, %157, %cst_57 {dimension_numbers = #tpu.dot_dimension_numbers<[1], [0], [0], [1], [0, 0, 1, 1], [], []>} : vector<32x256xf32>, vector<256x128xf32>, vector<32x128xf32> -> vector<32x128xf32>
    %c0_58 = arith.constant 0 : index
    %c0_59 = arith.constant 0 : index
    %c0_60 = arith.constant 0 : index
    %160 = vector.load %arg9[%c0_58, %c0_59, %c0_60] : memref<1x32x128xf32, #tpu.memory_space<vmem>>, vector<1x32x128xf32>
    %161 = vector.shape_cast %160 : vector<1x32x128xf32> to vector<32x128xf32>
    %162 = vector.shape_cast %159 : vector<32x128xf32> to vector<1x32x128xf32>
    tpu.vector_store %arg9[%c0_58, %c0_59, %c0_60], %162 {strides = array<i32>} : memref<1x32x128xf32, #tpu.memory_space<vmem>>, vector<1x32x128xf32>,
    %c0_61 = arith.constant 0 : index
    %c0_62 = arith.constant 0 : index
    %c0_63 = arith.constant 0 : index
    %163 = vector.load %arg10[%c0_61, %c0_62, %c0_63] : memref<1x1x128xi32, #tpu.memory_space<vmem>>, vector<1x1x128xi32>
    %164 = vector.shape_cast %163 : vector<1x1x128xi32> to vector<1x128xi32>
    %165 = vector.shape_cast %156 : vector<1x128xi32> to vector<1x1x128xi32>
    tpu.vector_store %arg10[%c0_61, %c0_62, %c0_63], %165 {strides = array<i32>} : memref<1x1x128xi32, #tpu.memory_space<vmem>>, vector<1x1x128xi32>,
    %166 = tpu.iota {dimensions = array<i32: 1>} : vector<1x128xi32>
    %c128_i32 = arith.constant 128 : i32
    %167 = arith.muli %arg1, %c128_i32 : i32
    %168 = vector.broadcast %167 : i32 to vector<1x128xi32>
    %169 = arith.addi %166, %168 : vector<1x128xi32>
    %c16_i32 = arith.constant 16 : i32
    %170 = vector.broadcast %c16_i32 : i32 to vector<1x128xi32>
    %171 = arith.cmpi slt, %169, %170 : vector<1x128xi32>
    %cst_64 = arith.constant 4.000000e+00 : f32
    %172 = vector.broadcast %cst_64 : f32 to vector<1x128xf32>
    %173 = arith.mulf %172, %75 : vector<1x128xf32>
    %174 = arith.subf %173, %154 : vector<1x128xf32>
    %cst_65 = arith.constant 0.000000e+00 : f32
    %175 = vector.broadcast %cst_65 : f32 to vector<1x128xf32>
    %176 = arith.select %171, %174, %175 : vector<1x128xi1>, vector<1x128xf32>
    %cst_66 = arith.constant dense<0.000000e+00> : vector<1xf32>
    %177 = vector.multi_reduction <add>, %176, %cst_66 [1] : vector<1x128xf32> to vector<1xf32>
    %178 = vector.shape_cast %177 : vector<1xf32> to vector<1x1xf32>
    %179 = vector.shape_cast %178 : vector<1x1xf32> to vector<1x1xf32>
    %180 = vector.broadcast %179 : vector<1x1xf32> to vector<1x128xf32>
    %c0_67 = arith.constant 0 : index
    %c0_68 = arith.constant 0 : index
    %c0_69 = arith.constant 0 : index
    %c0_70 = arith.constant 0 : index
    %181 = vector.load %arg12[%c0_67, %c0_68, %c0_69, %c0_70] : memref<1x1x1x128xf32, #tpu.memory_space<vmem>>, vector<1x1x1x128xf32>
    %182 = vector.shape_cast %181 : vector<1x1x1x128xf32> to vector<1x128xf32>
    %183 = vector.shape_cast %180 : vector<1x128xf32> to vector<1x1x1x128xf32>
    tpu.vector_store %arg12[%c0_67, %c0_68, %c0_69, %c0_70], %183 {strides = array<i32>} : memref<1x1x1x128xf32, #tpu.memory_space<vmem>>, vector<1x1x1x128xf32>,
    return
  }
  func.func @transform_0(%arg0: i32, %arg1: i32) -> (i32, i32, i32) {
    %c0_i32 = arith.constant 0 : i32
    %c0_i32_0 = arith.constant 0 : i32
    return %arg0, %c0_i32, %arg1 : i32, i32, i32
  }
  func.func @transform_1(%arg0: i32, %arg1: i32) -> (i32, i32) {
    %c0_i32 = arith.constant 0 : i32
    %c0_i32_0 = arith.constant 0 : i32
    %c0_i32_1 = arith.constant 0 : i32
    return %c0_i32, %c0_i32_0 : i32, i32
  }
  func.func @transform_2(%arg0: i32, %arg1: i32) -> (i32, i32) {
    %c0_i32 = arith.constant 0 : i32
    %c0_i32_0 = arith.constant 0 : i32
    %c0_i32_1 = arith.constant 0 : i32
    return %c0_i32, %c0_i32_0 : i32, i32
  }
  func.func @transform_3(%arg0: i32, %arg1: i32) -> (i32, i32) {
    %c0_i32 = arith.constant 0 : i32
    %c0_i32_0 = arith.constant 0 : i32
    %c0_i32_1 = arith.constant 0 : i32
    return %c0_i32, %c0_i32_0 : i32, i32
  }
  func.func @transform_4(%arg0: i32, %arg1: i32) -> (i32, i32) {
    %c0_i32 = arith.constant 0 : i32
    %c0_i32_0 = arith.constant 0 : i32
    %c0_i32_1 = arith.constant 0 : i32
    return %c0_i32, %c0_i32_0 : i32, i32
  }
  func.func @transform_5(%arg0: i32, %arg1: i32) -> (i32, i32) {
    %c0_i32 = arith.constant 0 : i32
    %c0_i32_0 = arith.constant 0 : i32
    %c0_i32_1 = arith.constant 0 : i32
    return %c0_i32, %c0_i32_0 : i32, i32
  }
  func.func @transform_6(%arg0: i32, %arg1: i32) -> (i32, i32) {
    %c0_i32 = arith.constant 0 : i32
    %c0_i32_0 = arith.constant 0 : i32
    %c0_i32_1 = arith.constant 0 : i32
    return %c0_i32, %c0_i32_0 : i32, i32
  }
  func.func @transform_7(%arg0: i32, %arg1: i32) -> (i32, i32, i32) {
    %c0_i32 = arith.constant 0 : i32
    %c0_i32_0 = arith.constant 0 : i32
    return %arg0, %c0_i32, %arg1 : i32, i32, i32
  }
  func.func @transform_8(%arg0: i32, %arg1: i32) -> (i32, i32, i32) {
    %c0_i32 = arith.constant 0 : i32
    %c0_i32_0 = arith.constant 0 : i32
    return %arg0, %c0_i32, %arg1 : i32, i32, i32
  }
  func.func @transform_9(%arg0: i32, %arg1: i32) -> (i32, i32, i32) {
    %c0_i32 = arith.constant 0 : i32
    %c0_i32_0 = arith.constant 0 : i32
    return %arg0, %c0_i32, %arg1 : i32, i32, i32
  }
  func.func @transform_10(%arg0: i32, %arg1: i32) -> (i32, i32, i32, i32) {
    %c0_i32 = arith.constant 0 : i32
    %c0_i32_0 = arith.constant 0 : i32
    %c0_i32_1 = arith.constant 0 : i32
    return %arg0, %arg1, %c0_i32, %c0_i32_0 : i32, i32, i32, i32
  }
}

</mosaic_0001>

<llo_original>
// kernel: music_vq_forward.1
$region0: #{music_vq_forward.1}
  #allocation0 [shape = 'u32[]', space=smem, size = 0x4, offset = 0x4, fixed_abs, tag = 'smem constant byte address 0x4 - core index']
  #allocation1 [shape = 'u32[144,128]{1,0:T(1,128)}', space=vmem, size = 0x12000, scoped, tag = 'internal scratch']
  %s0 = inlined_call_operand.vmem [shape: f32[2,9,128], index: 0, kind: input, shape index: {}]
  %s1 = inlined_call_operand.vmem [shape: f32[32,9], index: 1, kind: input, shape index: {}]
  %s2 = inlined_call_operand.vmem [shape: f32[8,9], index: 2, kind: input, shape index: {}]
  %s3 = inlined_call_operand.vmem [shape: f32[4,8], index: 3, kind: input, shape index: {}]
  %s4 = inlined_call_operand.vmem [shape: f32[4,1], index: 4, kind: input, shape index: {}]
  %s5 = inlined_call_operand.vmem [shape: f32[256,9], index: 5, kind: input, shape index: {}]
  %s6 = inlined_call_operand.vmem [shape: f32[32,256], index: 6, kind: input, shape index: {}]
  %s7 = inlined_call_operand.vmem [shape: f32[2,32,128], index: 7, kind: output, shape index: {0}]
  %s8 = inlined_call_operand.hbm [shape: s32[2,1,128], index: 8, kind: output, shape index: {1}]
  %s9 = inlined_call_operand.hbm [shape: f32[2,4,128], index: 9, kind: output, shape index: {2}]
  %s10 = inlined_call_operand.vmem [shape: f32[2,1,1,128], index: 10, kind: output, shape index: {3}]
  %11 = xla_tuple %s7, %s8, %s9, %s10
  %s12 = sld [smem:[#allocation0]]
  $region85: #{music_vq_forward.1} parent=0
    _
  %s14 = ssub.s32 1, %s12
  %s15 = scalar_select 0, %s14, %s12
  $region1: #{music_vq_forward.1} parent=0
    #allocation2 [shape = 'u8[1024]{0}', space=vmem, size = 0x400, scoped, tag = 'output window, operand 1']
    #allocation3 [shape = 's32[2]{0}', space=sflag, size = 0x8, scoped, tag = 'scoped memory for music_vq_forward.1']
    #allocation4 [shape = 'u8[4096]{0}', space=vmem, size = 0x1000, scoped, tag = 'output window, operand 2']
    #allocation5 [shape = 's32[2]{0}', space=sflag, size = 0x8, scoped, tag = 'scoped memory for music_vq_forward.1']
    %16 = vsyncpa [#allocation3], 0
    %s17 = scalar_lea.sflag [#allocation3], 1
    %18 = vsyncpa %s17, 0
    %19 = vsyncpa [#allocation5], 0
    %s20 = scalar_lea.sflag [#allocation5], 1
    %21 = vsyncpa %s20, 0
    loop: start=0, step=1, limit=4
    $region2: #{music_vq_forward.1} parent=1 // loop_pre_header
      _
    $region3: #{music_vq_forward.1} parent=1 // loop_header
      %s23 = sphi 0, %s27
      %p24 = scmp.ge.s32.totalorder %s23, 4
      %s30 = sphi 0, %s42
      %s31 = sphi 0, %s38
      %s32 = sphi 0, %s30
      %s33 = sphi 0, %s31
      %s34 = sphi 0, %s32
      %s35 = sphi 0, %s33
      %s47 = sphi 0, %s49
      %s50 = sphi 0, %s47
      %s51 = sphi 0, %s50
      %s67 = sphi 0, %s51
      %s71 = sphi 0, %s71
      %s73 = sphi 0, %s71
      %s74 = sphi 0, %s73
      %s88 = sphi 0, %s74
      %s92 = sphi 0, %s92
      %s94 = sphi 0, %s92
      %s95 = sphi 0, %s94
      %s109 = sphi 0, %s95
      %s113 = sphi 0, %s113
      %s115 = sphi 0, %s113
      %s116 = sphi 0, %s115
      %s130 = sphi 0, %s116
      %s134 = sphi 0, %s134
      %s136 = sphi 0, %s134
      %s137 = sphi 0, %s136
      %s151 = sphi 0, %s137
      %s155 = sphi 0, %s155
      %s157 = sphi 0, %s155
      %s158 = sphi 0, %s157
      %s172 = sphi 0, %s158
      %s176 = sphi 0, %s176
      %s178 = sphi 0, %s176
      %s179 = sphi 0, %s178
      %s193 = sphi 0, %s179
      %s201 = sphi 0, %s203
      %s204 = sphi 0, %s201
      %s205 = sphi 0, %s204
      %s221 = sphi 0, %s205
      %s229 = sphi 0, %s231
      %s232 = sphi 0, %s229
      %s233 = sphi 0, %s232
      %s249 = sphi 0, %s233
      %s257 = sphi 0, %s259
      %s260 = sphi 0, %s257
      %s261 = sphi 0, %s260
      %s277 = sphi 0, %s261
      %s285 = sphi 0, %s287
      %s288 = sphi 0, %s285
      %s289 = sphi 0, %s288
      %s305 = sphi 0, %s289
    $region4: #{music_vq_forward.1} parent=1 // loop_header_branch
      %26 = sbr.rel (%p24) target = $region8
    $region5: #{music_vq_forward.1} parent=1 // loop_body
      %s28 = ssub.s32 %s23, 1
      %s29 = ssub.s32 %s23, 2
      %s36 = sadd.s32 1, %s31
      %p37 = scmp.ge.s32.totalorder %s36, 1
      %s38 = scalar_select %p37, 0, %s36
      %s39 = sadd.s32 1, %s30
      %s40 = scalar_select %p37, %s39, %s30
      %p41 = scmp.ge.s32.totalorder %s40, 2
      %s42 = scalar_select %p41, 0, %s40
      %s43 = ssub.s32 %s30, %s42
      %s44 = ssub.s32 %s31, %s38
      %s45 = sor.u32 %s43, %s44
      %p46 = scmp.eq.s32.totalorder %s45, 0
      %s48 = sadd.s32 %s47, 1
      %s49 = scalar_select %p46, %s47, %s48
      %p52 = pneg %p46
      %p53 = scmp.eq.s32.totalorder %s23, 1
      %p54 = por %p52, %p53
      %p55 = scmp.ne.s32.totalorder %s47, %s50
      %p56 = scmp.eq.s32.totalorder %s23, 0
      %p57 = por %p55, %p56
      %p58 = scmp.ne.s32.totalorder %s47, %s50
      %p59 = scmp.eq.s32.totalorder %s28, 1
      %p60 = por %p58, %p59
      %p61 = scmp.ne.s32.totalorder %s50, %s51
      %p62 = scmp.eq.s32.totalorder %s28, 0
      %p63 = por %p61, %p62
      %p64 = scmp.ne.s32.totalorder %s50, %s51
      %p65 = scmp.eq.s32.totalorder %s29, 1
      %p66 = por %p64, %p65
      %p68 = scmp.ne.s32.totalorder %s51, %s67
      %p69 = scmp.eq.s32.totalorder %s29, 0
      %p70 = por %p68, %p69
      %s72 = sadd.s32 %s71, 1
      %p75 = scmp.eq.s32.totalorder %s23, 1
      %p76 = scmp.ne.s32.totalorder %s71, %s73
      %p77 = scmp.eq.s32.totalorder %s23, 0
      %p78 = por %p76, %p77
      %p79 = scmp.ne.s32.totalorder %s71, %s73
      %p80 = scmp.eq.s32.totalorder %s28, 1
      %p81 = por %p79, %p80
      %p82 = scmp.ne.s32.totalorder %s73, %s74
      %p83 = scmp.eq.s32.totalorder %s28, 0
      %p84 = por %p82, %p83
      %p85 = scmp.ne.s32.totalorder %s73, %s74
      %p86 = scmp.eq.s32.totalorder %s29, 1
      %p87 = por %p85, %p86
      %p89 = scmp.ne.s32.totalorder %s74, %s88
      %p90 = scmp.eq.s32.totalorder %s29, 0
      %p91 = por %p89, %p90
      %s93 = sadd.s32 %s92, 1
      %p96 = scmp.eq.s32.totalorder %s23, 1
      %p97 = scmp.ne.s32.totalorder %s92, %s94
      %p98 = scmp.eq.s32.totalorder %s23, 0
      %p99 = por %p97, %p98
      %p100 = scmp.ne.s32.totalorder %s92, %s94
      %p101 = scmp.eq.s32.totalorder %s28, 1
      %p102 = por %p100, %p101
      %p103 = scmp.ne.s32.totalorder %s94, %s95
      %p104 = scmp.eq.s32.totalorder %s28, 0
      %p105 = por %p103, %p104
      %p106 = scmp.ne.s32.totalorder %s94, %s95
      %p107 = scmp.eq.s32.totalorder %s29, 1
      %p108 = por %p106, %p107
      %p110 = scmp.ne.s32.totalorder %s95, %s109
      %p111 = scmp.eq.s32.totalorder %s29, 0
      %p112 = por %p110, %p111
      %s114 = sadd.s32 %s113, 1
      %p117 = scmp.eq.s32.totalorder %s23, 1
      %p118 = scmp.ne.s32.totalorder %s113, %s115
      %p119 = scmp.eq.s32.totalorder %s23, 0
      %p120 = por %p118, %p119
      %p121 = scmp.ne.s32.totalorder %s113, %s115
      %p122 = scmp.eq.s32.totalorder %s28, 1
      %p123 = por %p121, %p122
      %p124 = scmp.ne.s32.totalorder %s115, %s116
      %p125 = scmp.eq.s32.totalorder %s28, 0
      %p126 = por %p124, %p125
      %p127 = scmp.ne.s32.totalorder %s115, %s116
      %p128 = scmp.eq.s32.totalorder %s29, 1
      %p129 = por %p127, %p128
      %p131 = scmp.ne.s32.totalorder %s116, %s130
      %p132 = scmp.eq.s32.totalorder %s29, 0
      %p133 = por %p131, %p132
      %s135 = sadd.s32 %s134, 1
      %p138 = scmp.eq.s32.totalorder %s23, 1
      %p139 = scmp.ne.s32.totalorder %s134, %s136
      %p140 = scmp.eq.s32.totalorder %s23, 0
      %p141 = por %p139, %p140
      %p142 = scmp.ne.s32.totalorder %s134, %s136
      %p143 = scmp.eq.s32.totalorder %s28, 1
      %p144 = por %p142, %p143
      %p145 = scmp.ne.s32.totalorder %s136, %s137
      %p146 = scmp.eq.s32.totalorder %s28, 0
      %p147 = por %p145, %p146
      %p148 = scmp.ne.s32.totalorder %s136, %s137
      %p149 = scmp.eq.s32.totalorder %s29, 1
      %p150 = por %p148, %p149
      %p152 = scmp.ne.s32.totalorder %s137, %s151
      %p153 = scmp.eq.s32.totalorder %s29, 0
      %p154 = por %p152, %p153
      %s156 = sadd.s32 %s155, 1
      %p159 = scmp.eq.s32.totalorder %s23, 1
      %p160 = scmp.ne.s32.totalorder %s155, %s157
      %p161 = scmp.eq.s32.totalorder %s23, 0
      %p162 = por %p160, %p161
      %p163 = scmp.ne.s32.totalorder %s155, %s157
      %p164 = scmp.eq.s32.totalorder %s28, 1
      %p165 = por %p163, %p164
      %p166 = scmp.ne.s32.totalorder %s157, %s158
      %p167 = scmp.eq.s32.totalorder %s28, 0
      %p168 = por %p166, %p167
      %p169 = scmp.ne.s32.totalorder %s157, %s158
      %p170 = scmp.eq.s32.totalorder %s29, 1
      %p171 = por %p169, %p170
      %p173 = scmp.ne.s32.totalorder %s158, %s172
      %p174 = scmp.eq.s32.totalorder %s29, 0
      %p175 = por %p173, %p174
      %s177 = sadd.s32 %s176, 1
      %p180 = scmp.eq.s32.totalorder %s23, 1
      %p181 = scmp.ne.s32.totalorder %s176, %s178
      %p182 = scmp.eq.s32.totalorder %s23, 0
      %p183 = por %p181, %p182
      %p184 = scmp.ne.s32.totalorder %s176, %s178
      %p185 = scmp.eq.s32.totalorder %s28, 1
      %p186 = por %p184, %p185
      %p187 = scmp.ne.s32.totalorder %s178, %s179
      %p188 = scmp.eq.s32.totalorder %s28, 0
      %p189 = por %p187, %p188
      %p190 = scmp.ne.s32.totalorder %s178, %s179
      %p191 = scmp.eq.s32.totalorder %s29, 1
      %p192 = por %p190, %p191
      %p194 = scmp.ne.s32.totalorder %s179, %s193
      %p195 = scmp.eq.s32.totalorder %s29, 0
      %p196 = por %p194, %p195
      %s197 = ssub.s32 %s30, %s42
      %s198 = ssub.s32 %s31, %s38
      %s199 = sor.u32 %s197, %s198
      %p200 = scmp.eq.s32.totalorder %s199, 0
      %s202 = sadd.s32 %s201, 1
      %s203 = scalar_select %p200, %s201, %s202
      %p206 = pneg %p200
      %p207 = scmp.eq.s32.totalorder %s23, 1
      %p208 = por %p206, %p207
      %p209 = scmp.ne.s32.totalorder %s201, %s204
      %p210 = scmp.eq.s32.totalorder %s23, 0
      %p211 = por %p209, %p210
      %p212 = scmp.ne.s32.totalorder %s201, %s204
      %p213 = scmp.eq.s32.totalorder %s28, 1
      %p214 = por %p212, %p213
      %p215 = scmp.ne.s32.totalorder %s204, %s205
      %p216 = scmp.eq.s32.totalorder %s28, 0
      %p217 = por %p215, %p216
      %p218 = scmp.ne.s32.totalorder %s204, %s205
      %p219 = scmp.eq.s32.totalorder %s29, 1
      %p220 = por %p218, %p219
      %p222 = scmp.ne.s32.totalorder %s205, %s221
      %p223 = scmp.eq.s32.totalorder %s29, 0
      %p224 = por %p222, %p223
      %s225 = ssub.s32 %s30, %s42
      %s226 = ssub.s32 %s31, %s38
      %s227 = sor.u32 %s225, %s226
      %p228 = scmp.eq.s32.totalorder %s227, 0
      %s230 = sadd.s32 %s229, 1
      %s231 = scalar_select %p228, %s229, %s230
      %p234 = pneg %p228
      %p235 = scmp.eq.s32.totalorder %s23, 1
      %p236 = por %p234, %p235
      %p237 = scmp.ne.s32.totalorder %s229, %s232
      %p238 = scmp.eq.s32.totalorder %s23, 0
      %p239 = por %p237, %p238
      %p240 = scmp.ne.s32.totalorder %s229, %s232
      %p241 = scmp.eq.s32.totalorder %s28, 1
      %p242 = por %p240, %p241
      %p243 = scmp.ne.s32.totalorder %s232, %s233
      %p244 = scmp.eq.s32.totalorder %s28, 0
      %p245 = por %p243, %p244
      %p246 = scmp.ne.s32.totalorder %s232, %s233
      %p247 = scmp.eq.s32.totalorder %s29, 1
      %p248 = por %p246, %p247
      %p250 = scmp.ne.s32.totalorder %s233, %s249
      %p251 = scmp.eq.s32.totalorder %s29, 0
      %p252 = por %p250, %p251
      %s253 = ssub.s32 %s30, %s42
      %s254 = ssub.s32 %s31, %s38
      %s255 = sor.u32 %s253, %s254
      %p256 = scmp.eq.s32.totalorder %s255, 0
      %s258 = sadd.s32 %s257, 1
      %s259 = scalar_select %p256, %s257, %s258
      %p262 = pneg %p256
      %p263 = scmp.eq.s32.totalorder %s23, 1
      %p264 = por %p262, %p263
      %p265 = scmp.ne.s32.totalorder %s257, %s260
      %p266 = scmp.eq.s32.totalorder %s23, 0
      %p267 = por %p265, %p266
      %p268 = scmp.ne.s32.totalorder %s257, %s260
      %p269 = scmp.eq.s32.totalorder %s28, 1
      %p270 = por %p268, %p269
      %p271 = scmp.ne.s32.totalorder %s260, %s261
      %p272 = scmp.eq.s32.totalorder %s28, 0
      %p273 = por %p271, %p272
      %p274 = scmp.ne.s32.totalorder %s260, %s261
      %p275 = scmp.eq.s32.totalorder %s29, 1
      %p276 = por %p274, %p275
      %p278 = scmp.ne.s32.totalorder %s261, %s277
      %p279 = scmp.eq.s32.totalorder %s29, 0
      %p280 = por %p278, %p279
      %s281 = ssub.s32 %s30, %s42
      %s282 = ssub.s32 %s31, %s38
      %s283 = sor.u32 %s281, %s282
      %p284 = scmp.eq.s32.totalorder %s283, 0
      %s286 = sadd.s32 %s285, 1
      %s287 = scalar_select %p284, %s285, %s286
      %p290 = pneg %p284
      %p291 = scmp.eq.s32.totalorder %s23, 1
      %p292 = por %p290, %p291
      %p293 = scmp.ne.s32.totalorder %s285, %s288
      %p294 = scmp.eq.s32.totalorder %s23, 0
      %p295 = por %p293, %p294
      %p296 = scmp.ne.s32.totalorder %s285, %s288
      %p297 = scmp.eq.s32.totalorder %s28, 1
      %p298 = por %p296, %p297
      %p299 = scmp.ne.s32.totalorder %s288, %s289
      %p300 = scmp.eq.s32.totalorder %s28, 0
      %p301 = por %p299, %p300
      %p302 = scmp.ne.s32.totalorder %s288, %s289
      %p303 = scmp.eq.s32.totalorder %s29, 1
      %p304 = por %p302, %p303
      %p306 = scmp.ne.s32.totalorder %s289, %s305
      %p307 = scmp.eq.s32.totalorder %s29, 0
      %p308 = por %p306, %p307
      %p309 = scmp.le.s32.totalorder 1, %s23
      %p310 = scmp.lt.s32.totalorder %s23, 3
      %p311 = pnand %p309, %p310
      %p312 = pneg %p311
      // Predicated region
      $region9: #{music_vq_forward.1} parent=5 // pred_check
        _
      $region10: #{music_vq_forward.1} parent=5 // pred_check_branch
        %314 = sbr.rel (%p311) target = $region12
      $region11: #{music_vq_forward.1} parent=5 // pred_region
        %s315 = ssub.s32 %s23, 1
        // Predicated region
        $region13: #{music_vq_forward.1} parent=11 // pred_check
          %p316 = pneg %p84
        $region14: #{music_vq_forward.1} parent=11 // pred_check_branch
          %318 = sbr.rel (%p316) target = $region16
        $region15: #{music_vq_forward.1} parent=11 // pred_region
          _
        $region16: #{music_vq_forward.1} parent=11 // pred_fallthru
          _
        // Predicated region
        $region17: #{music_vq_forward.1} parent=11 // pred_check
          %p319 = pneg %p105
        $region18: #{music_vq_forward.1} parent=11 // pred_check_branch
          %321 = sbr.rel (%p319) target = $region20
        $region19: #{music_vq_forward.1} parent=11 // pred_region
          _
        $region20: #{music_vq_forward.1} parent=11 // pred_fallthru
          _
        // Predicated region
        $region21: #{music_vq_forward.1} parent=11 // pred_check
          %p322 = pneg %p126
        $region22: #{music_vq_forward.1} parent=11 // pred_check_branch
          %324 = sbr.rel (%p322) target = $region24
        $region23: #{music_vq_forward.1} parent=11 // pred_region
          _
        $region24: #{music_vq_forward.1} parent=11 // pred_fallthru
          _
        // Predicated region
        $region25: #{music_vq_forward.1} parent=11 // pred_check
          %p325 = pneg %p147
        $region26: #{music_vq_forward.1} parent=11 // pred_check_branch
          %327 = sbr.rel (%p325) target = $region28
        $region27: #{music_vq_forward.1} parent=11 // pred_region
          _
        $region28: #{music_vq_forward.1} parent=11 // pred_fallthru
          _
        // Predicated region
        $region29: #{music_vq_forward.1} parent=11 // pred_check
          %p328 = pneg %p168
        $region30: #{music_vq_forward.1} parent=11 // pred_check_branch
          %330 = sbr.rel (%p328) target = $region32
        $region31: #{music_vq_forward.1} parent=11 // pred_region
          _
        $region32: #{music_vq_forward.1} parent=11 // pred_fallthru
          _
        // Predicated region
        $region33: #{music_vq_forward.1} parent=11 // pred_check
          %p331 = pneg %p189
        $region34: #{music_vq_forward.1} parent=11 // pred_check_branch
          %333 = sbr.rel (%p331) target = $region36
        $region35: #{music_vq_forward.1} parent=11 // pred_region
          _
        $region36: #{music_vq_forward.1} parent=11 // pred_fallthru
          _
      $region12: #{music_vq_forward.1} parent=5 // pred_fallthru
        _
      %p334 = scmp.lt.s32.totalorder %s23, 2
      // Predicated region
      $region37: #{music_vq_forward.1} parent=5 // pred_check
        %p335 = pneg %p334
      $region38: #{music_vq_forward.1} parent=5 // pred_check_branch
        %337 = sbr.rel (%p335) target = $region40
      $region39: #{music_vq_forward.1} parent=5 // pred_region
        // Predicated region
        $region41: #{music_vq_forward.1} parent=39 // pred_check
          %p338 = pneg %p57
        $region42: #{music_vq_forward.1} parent=39 // pred_check_branch
          %340 = sbr.rel (%p338) target = $region44
        $region43: #{music_vq_forward.1} parent=39 // pred_region
          %p341 = scmp.lt.s32.totalorder %s30, 1
          %s342 = scalar_select %p341, %s30, 1
          %p343 = scmp.lt.s32.totalorder %s31, 0
          %s344 = scalar_select %p343, %s31, 0
          %s345 = smul.addr %s342, 2
          %s346 = sadd.s32 %s344, %s345
          %s347 = smul.addr %s346, 8
          %s348 = scalar_lea.vmem %s0, %s347
        $region44: #{music_vq_forward.1} parent=39 // pred_fallthru
          _
      $region40: #{music_vq_forward.1} parent=5 // pred_fallthru
        _
      %p349 = scmp.le.s32.totalorder 1, %s23
      %p350 = scmp.lt.s32.totalorder %s23, 3
      %p351 = pnand %p349, %p350
      %p352 = pneg %p351
      // Predicated region
      $region45: #{music_vq_forward.1} parent=5 // pred_check
        _
      $region46: #{music_vq_forward.1} parent=5 // pred_check_branch
        %354 = sbr.rel (%p351) target = $region48
      $region47: #{music_vq_forward.1} parent=5 // pred_region
        %s355 = ssub.s32 %s23, 1
        %p356 = scmp.lt.s32.totalorder %s32, 1
        %s357 = scalar_select %p356, %s32, 1
        %p358 = scmp.lt.s32.totalorder %s33, 0
        %s359 = scalar_select %p358, %s33, 0
        %s360 = smul.addr %s357, 2
        %s361 = sadd.s32 %s359, %s360
        %s362 = smul.addr %s361, 8
        %s363 = scalar_lea.vmem %s0, %s362
        %p364 = pneg %p63
        %p365 = pneg %p60
        %p366 = pneg %p84
        %p367 = pneg %p81
        %p368 = pneg %p105
        %p369 = pneg %p102
        %p370 = pneg %p126
        %p371 = pneg %p123
        %p372 = pneg %p147
        %p373 = pneg %p144
        %p374 = pneg %p168
        %p375 = pneg %p165
        %p376 = pneg %p189
        %p377 = pneg %p186
        %p378 = pneg %p217
        %p379 = pneg %p214
        %p380 = scmp.lt.s32.totalorder %s32, 1
        %s381 = scalar_select %p380, %s32, 1
        %p382 = scmp.lt.s32.totalorder %s33, 0
        %s383 = scalar_select %p382, %s33, 0
        %s384 = smul.addr %s381, 4
        %s385 = sadd.s32 %s383, %s384
        %s386 = smul.addr %s385, 8
        %s387 = scalar_lea.vmem %s7, %s386
        %p388 = pneg %p245
        %p389 = pneg %p242
        %s390 = sand.u32 %s232, 1
        %s391 = scalar_lea.sflag [#allocation3], %s390
        %s392 = sand.u32 %s232, 1
        %s393 = scalar_lea.vmem [#allocation2], %s392
        %p394 = pneg %p273
        %p395 = pneg %p270
        %s396 = sand.u32 %s260, 1
        %s397 = scalar_lea.sflag [#allocation5], %s396
        %s398 = sand.u32 %s260, 1
        %s399 = smul.addr %s398, 4
        %s400 = scalar_lea.vmem [#allocation4], %s399
        %p401 = pneg %p301
        %p402 = pneg %p298
        %p403 = scmp.lt.s32.totalorder %s32, 1
        %s404 = scalar_select %p403, %s32, 1
        %p405 = scmp.lt.s32.totalorder %s33, 0
        %s406 = scalar_select %p405, %s33, 0
        %s407 = sadd.s32 %s406, %s404
        %s408 = scalar_lea.vmem %s10, %s407
        %p409 = scmp.lt.s32.totalorder %s32, 1
        %s410 = scalar_select %p409, %s32, 1
        %p411 = scmp.lt.s32.totalorder %s33, 0
        %s412 = scalar_select %p411, %s33, 0
        %s413 = smul.addr %s410, 2
        %s414 = sadd.s32 %s412, %s413
        %s415 = smul.addr %s414, 8
        %s416 = scalar_lea.vmem %s0, %s415
        %p417 = scmp.lt.s32.totalorder %s32, 1
        %s418 = scalar_select %p417, %s32, 1
        %p419 = scmp.lt.s32.totalorder %s33, 0
        %s420 = scalar_select %p419, %s33, 0
        %s421 = smul.addr %s418, 4
        %s422 = sadd.s32 %s420, %s421
        %s423 = smul.addr %s422, 8
        %s424 = scalar_lea.vmem %s7, %s423
        %p425 = scmp.lt.s32.totalorder %s32, 1
        %s426 = scalar_select %p425, %s32, 1
        %p427 = scmp.lt.s32.totalorder %s33, 0
        %s428 = scalar_select %p427, %s33, 0
        %s429 = sadd.s32 %s428, %s426
        %s430 = scalar_lea.vmem %s10, %s429
        %v431 = vld [vmem:[%s416] sm:$0xff]
        %v432 = vld [vmem:[%s416 + $0x8] sm:$0x1]
        %v433 = vld [vmem:[%s2] sm:$0xff]
        %vm434 = vcmask 72704
        %v436 = vsel %vm434, %v433, 0
        %vm438 = vcmask 1040384
        %v440 = vsel %vm438, %v432, 0
        %442 = vmatprep.subr.mxu0 0.0
        %443 = vmatpush1.msra.mxu0 0.0
        %444 = vmatprep.subr.mxu0 0.0
        %445 = vmatpush1.msra.mxu0 0.0
        %446 = vmatprep.subr.mxu0 0.0
        %447 = vmatpush1.msra.mxu0 0.0
        %448 = vmatprep.subr.mxu0 0.0
        %449 = vmatpush1.msra.mxu0 0.0
        %450 = vmatprep.subr.mxu0 0.0
        %451 = vmatpush1.msra.mxu0 0.0
        %452 = vmatprep.subr.mxu0 0.0
        %453 = vmatpush1.msra.mxu0 0.0
        %454 = vmatprep.subr.mxu0 0.0
        %455 = vmatpush1.msra.mxu0 0.0
        %456 = vmatprep.subr.mxu0 0.0
        %457 = vmatpush1.msra.mxu0 0.0
        %458 = vmatprep.subr.mxu0 0.0
        %459 = vmatpush1.msra.mxu0 0.0
        %460 = vmatprep.subr.mxu0 0.0
        %461 = vmatpush1.msra.mxu0 0.0
        %462 = vmatprep.subr.mxu0 0.0
        %463 = vmatpush1.msra.mxu0 0.0
        %464 = vmatprep.subr.mxu0 0.0
        %465 = vmatpush1.msra.mxu0 0.0
        %466 = vmatprep.subr.mxu0 0.0
        %467 = vmatpush1.msra.mxu0 0.0
        %468 = vmatprep.subr.mxu0 0.0
        %469 = vmatpush1.msra.mxu0 0.0
        %470 = vmatprep.subr.mxu0 0.0
        %471 = vmatpush1.msra.mxu0 %v440
        %472 = vmatprep.subr.mxu0 0.0
        %473 = vmatpush1.msra.mxu0 %v431
        %474 = vmatprep.subr.mxu0 0.0
        %475 = vmatpush2.msra.mxu0 0.0
        %476 = vmatprep.subr.mxu0 0.0
        %477 = vmatpush2.msra.mxu0 0.0
        %478 = vmatprep.subr.mxu0 0.0
        %479 = vmatpush2.msra.mxu0 0.0
        %480 = vmatprep.subr.mxu0 0.0
        %481 = vmatpush2.msra.mxu0 0.0
        %482 = vmatprep.subr.mxu0 0.0
        %483 = vmatpush2.msra.mxu0 0.0
        %484 = vmatprep.subr.mxu0 0.0
        %485 = vmatpush2.msra.mxu0 0.0
        %486 = vmatprep.subr.mxu0 0.0
        %487 = vmatpush2.msra.mxu0 0.0
        %488 = vmatprep.subr.mxu0 0.0
        %489 = vmatpush2.msra.mxu0 0.0
        %490 = vmatprep.subr.mxu0 0.0
        %491 = vmatpush2.msra.mxu0 0.0
        %492 = vmatprep.subr.mxu0 0.0
        %493 = vmatpush2.msra.mxu0 0.0
        %494 = vmatprep.subr.mxu0 0.0
        %495 = vmatpush2.msra.mxu0 0.0
        %496 = vmatprep.subr.mxu0 0.0
        %497 = vmatpush2.msra.mxu0 0.0
        %498 = vmatprep.subr.mxu0 0.0
        %499 = vmatpush2.msra.mxu0 0.0
        %500 = vmatprep.subr.mxu0 0.0
        %501 = vmatpush2.msra.mxu0 0.0
        %502 = vmatprep.subr.mxu0 0.0
        %503 = vmatpush2.msra.mxu0 0.0
        %504 = vmatprep.subr.mxu0 0.0
        %505 = vmatpush2.msra.mxu0 0.0
        %506 = vmatprep.mubr.f32.mxu0 0.0
        %507 = vmatmul.mubr.f32.gmra.mxu0 %v436
        %v508 = vpop.f32.mrf.mxu0
        %v509 = vadd.f32 0.0, %v508
        %v510 = vpop.f32.mrf.mxu0
        %511 = vdwg.mxu0
        %v512 = vmul.f32 %v509, 0.5
        %v513 = vmul.f32 %v509, 0.70710677
        %v514 = vmax.f32 %v513, -4.0
        %v515 = vmin.f32 %v514, 4.0
        %v516 = vmul.f32 %v515, %v515
        %v517 = vmul.f32 %v516, -2.7261424e-10
        %v518 = vadd.f32 %v517, 2.7706815e-08
        %v519 = vmul.f32 %v518, %v516
        %v520 = vadd.f32 %v519, -2.101024e-06
        %v521 = vmul.f32 %v520, %v516
        %v522 = vadd.f32 %v521, -5.6925062e-05
        %v523 = vmul.f32 %v522, %v516
        %v524 = vadd.f32 %v523, -0.00073499064
        %v525 = vmul.f32 %v524, %v516
        %v526 = vadd.f32 %v525, -0.0029546001
        %v527 = vmul.f32 %v526, %v516
        %v528 = vadd.f32 %v527, -0.016096033
        %v529 = vmul.f32 %v516, -1.45660715e-05
        %v530 = vadd.f32 %v529, -0.00021337405
        %v531 = vmul.f32 %v530, %v516
        %v532 = vadd.f32 %v531, -0.001682827
        %v533 = vmul.f32 %v532, %v516
        %v534 = vadd.f32 %v533, -0.0073733293
        %v535 = vmul.f32 %v534, %v516
        %v536 = vadd.f32 %v535, -0.014264739
        %v537 = vmul.f32 %v515, %v528
        %v538 = vrcp.pop %v536
        %v539 = vmul.f32 %v537, %v538
        %v540 = vadd.f32 %v539, 1.0
        %v541 = vmul.f32 %v512, %v540
        %v542 = vld [vmem:[%s3] sm:$0xf]
        %v543 = vld [vmem:[%s4] sm:$0xf]
        %545 = vset.pattern.permute.xlu0 0
        %546 = vperm.xlu0 %545, %v543
        %v547 = vpop.permute.xlu0 %546
        %vm549 = vcmask 64512
        %v551 = vsel %vm549, %v542, 0
        %553 = vmatprep.subr.mxu0 0.0
        %554 = vmatpush1.msra.mxu0 0.0
        %555 = vmatprep.subr.mxu0 0.0
        %556 = vmatpush1.msra.mxu0 0.0
        %557 = vmatprep.subr.mxu0 0.0
        %558 = vmatpush1.msra.mxu0 0.0
        %559 = vmatprep.subr.mxu0 0.0
        %560 = vmatpush1.msra.mxu0 0.0
        %561 = vmatprep.subr.mxu0 0.0
        %562 = vmatpush1.msra.mxu0 0.0
        %563 = vmatprep.subr.mxu0 0.0
        %564 = vmatpush1.msra.mxu0 0.0
        %565 = vmatprep.subr.mxu0 0.0
        %566 = vmatpush1.msra.mxu0 0.0
        %567 = vmatprep.subr.mxu0 0.0
        %568 = vmatpush1.msra.mxu0 0.0
        %569 = vmatprep.subr.mxu0 0.0
        %570 = vmatpush1.msra.mxu0 0.0
        %571 = vmatprep.subr.mxu0 0.0
        %572 = vmatpush1.msra.mxu0 0.0
        %573 = vmatprep.subr.mxu0 0.0
        %574 = vmatpush1.msra.mxu0 0.0
        %575 = vmatprep.subr.mxu0 0.0
        %576 = vmatpush1.msra.mxu0 0.0
        %577 = vmatprep.subr.mxu0 0.0
        %578 = vmatpush1.msra.mxu0 0.0
        %579 = vmatprep.subr.mxu0 0.0
        %580 = vmatpush1.msra.mxu0 0.0
        %581 = vmatprep.subr.mxu0 0.0
        %582 = vmatpush1.msra.mxu0 0.0
        %583 = vmatprep.subr.mxu0 0.0
        %584 = vmatpush1.msra.mxu0 %v541
        %585 = vmatprep.subr.mxu0 0.0
        %586 = vmatpush2.msra.mxu0 0.0
        %587 = vmatprep.subr.mxu0 0.0
        %588 = vmatpush2.msra.mxu0 0.0
        %589 = vmatprep.subr.mxu0 0.0
        %590 = vmatpush2.msra.mxu0 0.0
        %591 = vmatprep.subr.mxu0 0.0
        %592 = vmatpush2.msra.mxu0 0.0
        %593 = vmatprep.subr.mxu0 0.0
        %594 = vmatpush2.msra.mxu0 0.0
        %595 = vmatprep.subr.mxu0 0.0
        %596 = vmatpush2.msra.mxu0 0.0
        %597 = vmatprep.subr.mxu0 0.0
        %598 = vmatpush2.msra.mxu0 0.0
        %599 = vmatprep.subr.mxu0 0.0
        %600 = vmatpush2.msra.mxu0 0.0
        %601 = vmatprep.subr.mxu0 0.0
        %602 = vmatpush2.msra.mxu0 0.0
        %603 = vmatprep.subr.mxu0 0.0
        %604 = vmatpush2.msra.mxu0 0.0
        %605 = vmatprep.subr.mxu0 0.0
        %606 = vmatpush2.msra.mxu0 0.0
        %607 = vmatprep.subr.mxu0 0.0
        %608 = vmatpush2.msra.mxu0 0.0
        %609 = vmatprep.subr.mxu0 0.0
        %610 = vmatpush2.msra.mxu0 0.0
        %611 = vmatprep.subr.mxu0 0.0
        %612 = vmatpush2.msra.mxu0 0.0
        %613 = vmatprep.subr.mxu0 0.0
        %614 = vmatpush2.msra.mxu0 0.0
        %615 = vmatprep.subr.mxu0 0.0
        %616 = vmatpush2.msra.mxu0 0.0
        %617 = vmatprep.mubr.f32.mxu0 0.0
        %618 = vmatmul.mubr.f32.gmra.mxu0 %v551
        %v619 = vpop.f32.mrf.mxu0
        %v620 = vadd.f32 %v547, %v619
        %v621 = vpop.f32.mrf.mxu0
        %622 = vdwg.mxu0
        %vm623 = vcmask 1043456
        %v624 = vsel %vm623, %v620, -inf
        %v625 = vrot.slane %v624, 4
        %v626 = vmax.f32 %v624, %v625
        %v627 = vrot.slane %v626, 2
        %v628 = vmax.f32 %v626, %v627
        %v629 = vrot.slane %v628, 1
        %v630 = vmax.f32 %v628, %v629
        %v631 = vsub.f32 %v620, %v630
        %v632 = vmul.f32 %v631, 1.442695
        %v633 = vpow.pop %v632
        %v634 = vsel %vm623, %v633, 0.0
        %v635 = vrot.slane %v634, 4
        %v636 = vadd.f32 %v634, %v635
        %v637 = vrot.slane %v636, 2
        %v638 = vadd.f32 %v636, %v637
        %v639 = vrot.slane %v638, 1
        %v640 = vadd.f32 %v638, %v639
        %v641 = vrcp.pop %v640
        %v642 = vmul.f32 %v633, %v641
        %643 = vst [vmem:[%s400] sm:$0xf] %v642
        %v644 = vsel %vm623, %v642, -inf
        %v645 = vrot.slane %v644, 4
        %v646 = vmax.f32 %v644, %v645
        %v647 = vrot.slane %v646, 2
        %v648 = vmax.f32 %v646, %v647
        %v649 = vrot.slane %v648, 1
        %v650 = vmax.f32 %v648, %v649
        %v651 = vld [vmem:[%s1] sm:$0xff]
        %v652 = vld [vmem:[%s1 + $0x8] sm:$0xff]
        %v653 = vld [vmem:[%s1 + $0x10] sm:$0xff]
        %v654 = vld [vmem:[%s1 + $0x18] sm:$0xff]
        %v656 = vsel %vm434, %v651, 0
        %v659 = vsel %vm434, %v652, 0
        %v662 = vsel %vm434, %v653, 0
        %v665 = vsel %vm434, %v654, 0
        %667 = vmatprep.subr.mxu0 0.0
        %668 = vmatpush1.msra.mxu0 0.0
        %669 = vmatprep.subr.mxu0 0.0
        %670 = vmatpush1.msra.mxu0 0.0
        %671 = vmatprep.subr.mxu0 0.0
        %672 = vmatpush1.msra.mxu0 0.0
        %673 = vmatprep.subr.mxu0 0.0
        %674 = vmatpush1.msra.mxu0 0.0
        %675 = vmatprep.subr.mxu0 0.0
        %676 = vmatpush1.msra.mxu0 0.0
        %677 = vmatprep.subr.mxu0 0.0
        %678 = vmatpush1.msra.mxu0 0.0
        %679 = vmatprep.subr.mxu0 0.0
        %680 = vmatpush1.msra.mxu0 0.0
        %681 = vmatprep.subr.mxu0 0.0
        %682 = vmatpush1.msra.mxu0 0.0
        %683 = vmatprep.subr.mxu0 0.0
        %684 = vmatpush1.msra.mxu0 0.0
        %685 = vmatprep.subr.mxu0 0.0
        %686 = vmatpush1.msra.mxu0 0.0
        %687 = vmatprep.subr.mxu0 0.0
        %688 = vmatpush1.msra.mxu0 0.0
        %689 = vmatprep.subr.mxu0 0.0
        %690 = vmatpush1.msra.mxu0 0.0
        %691 = vmatprep.subr.mxu0 0.0
        %692 = vmatpush1.msra.mxu0 0.0
        %693 = vmatprep.subr.mxu0 0.0
        %694 = vmatpush1.msra.mxu0 0.0
        %695 = vmatprep.subr.mxu0 0.0
        %696 = vmatpush1.msra.mxu0 %v440
        %697 = vmatprep.subr.mxu0 0.0
        %698 = vmatpush1.msra.mxu0 %v431
        %699 = vmatprep.subr.mxu0 0.0
        %700 = vmatpush2.msra.mxu0 0.0
        %701 = vmatprep.subr.mxu0 0.0
        %702 = vmatpush2.msra.mxu0 0.0
        %703 = vmatprep.subr.mxu0 0.0
        %704 = vmatpush2.msra.mxu0 0.0
        %705 = vmatprep.subr.mxu0 0.0
        %706 = vmatpush2.msra.mxu0 0.0
        %707 = vmatprep.subr.mxu0 0.0
        %708 = vmatpush2.msra.mxu0 0.0
        %709 = vmatprep.subr.mxu0 0.0
        %710 = vmatpush2.msra.mxu0 0.0
        %711 = vmatprep.subr.mxu0 0.0
        %712 = vmatpush2.msra.mxu0 0.0
        %713 = vmatprep.subr.mxu0 0.0
        %714 = vmatpush2.msra.mxu0 0.0
        %715 = vmatprep.subr.mxu0 0.0
        %716 = vmatpush2.msra.mxu0 0.0
        %717 = vmatprep.subr.mxu0 0.0
        %718 = vmatpush2.msra.mxu0 0.0
        %719 = vmatprep.subr.mxu0 0.0
        %720 = vmatpush2.msra.mxu0 0.0
        %721 = vmatprep.subr.mxu0 0.0
        %722 = vmatpush2.msra.mxu0 0.0
        %723 = vmatprep.subr.mxu0 0.0
        %724 = vmatpush2.msra.mxu0 0.0
        %725 = vmatprep.subr.mxu0 0.0
        %726 = vmatpush2.msra.mxu0 0.0
        %727 = vmatprep.subr.mxu0 0.0
        %728 = vmatpush2.msra.mxu0 0.0
        %729 = vmatprep.subr.mxu0 0.0
        %730 = vmatpush2.msra.mxu0 0.0
        %731 = vmatprep.mubr.f32.mxu0 0.0
        %732 = vmatmul.mubr.f32.gmra.mxu0 %v656
        %v733 = vpop.f32.mrf.mxu0
        %v734 = vadd.f32 0.0, %v733
        %v735 = vpop.f32.mrf.mxu0
        %736 = vmatprep.mubr.f32.mxu0 0.0
        %737 = vmatmul.mubr.f32.gmra.mxu0 %v659
        %v738 = vpop.f32.mrf.mxu0
        %v739 = vadd.f32 0.0, %v738
        %v740 = vpop.f32.mrf.mxu0
        %741 = vmatprep.mubr.f32.mxu0 0.0
        %742 = vmatmul.mubr.f32.gmra.mxu0 %v662
        %v743 = vpop.f32.mrf.mxu0
        %v744 = vadd.f32 0.0, %v743
        %v745 = vpop.f32.mrf.mxu0
        %746 = vmatprep.mubr.f32.mxu0 0.0
        %747 = vmatmul.mubr.f32.gmra.mxu0 %v665
        %v748 = vpop.f32.mrf.mxu0
        %v749 = vadd.f32 0.0, %v748
        %v750 = vpop.f32.mrf.mxu0
        %751 = vdwg.mxu0
        %v752 = vmul.f32 %v734, %v734
        %v753 = vmul.f32 %v739, %v739
        %v754 = vmul.f32 %v744, %v744
        %v755 = vmul.f32 %v749, %v749
        %v756 = vadd.f32 %v752, %v753
        %v757 = vadd.f32 %v756, %v754
        %v758 = vadd.f32 %v757, %v755
        %v759 = vrot.slane %v758, 4
        %v760 = vadd.f32 %v758, %v759
        %v761 = vrot.slane %v760, 2
        %v762 = vadd.f32 %v760, %v761
        %v763 = vrot.slane %v762, 1
        %v764 = vadd.f32 %v762, %v763
        %v765 = vld [vmem:[%s5] sm:$0xff]
        %v766 = vld [vmem:[%s5 + $0x8] sm:$0xff]
        %v767 = vld [vmem:[%s5 + $0x10] sm:$0xff]
        %v768 = vld [vmem:[%s5 + $0x18] sm:$0xff]
        %v769 = vld [vmem:[%s5 + $0x20] sm:$0xff]
        %v770 = vld [vmem:[%s5 + $0x28] sm:$0xff]
        %v771 = vld [vmem:[%s5 + $0x30] sm:$0xff]
        %v772 = vld [vmem:[%s5 + $0x38] sm:$0xff]
        %v773 = vld [vmem:[%s5 + $0x40] sm:$0xff]
        %v774 = vld [vmem:[%s5 + $0x48] sm:$0xff]
        %v775 = vld [vmem:[%s5 + $0x50] sm:$0xff]
        %v776 = vld [vmem:[%s5 + $0x58] sm:$0xff]
        %v777 = vld [vmem:[%s5 + $0x60] sm:$0xff]
        %v778 = vld [vmem:[%s5 + $0x68] sm:$0xff]
        %v779 = vld [vmem:[%s5 + $0x70] sm:$0xff]
        %v780 = vld [vmem:[%s5 + $0x78] sm:$0xff]
        %v781 = vld [vmem:[%s5 + $0x80] sm:$0xff]
        %v782 = vld [vmem:[%s5 + $0x88] sm:$0xff]
        %v783 = vld [vmem:[%s5 + $0x90] sm:$0xff]
        %v784 = vld [vmem:[%s5 + $0x98] sm:$0xff]
        %v785 = vld [vmem:[%s5 + $0xa0] sm:$0xff]
        %v786 = vld [vmem:[%s5 + $0xa8] sm:$0xff]
        %v787 = vld [vmem:[%s5 + $0xb0] sm:$0xff]
        %v788 = vld [vmem:[%s5 + $0xb8] sm:$0xff]
        %v789 = vld [vmem:[%s5 + $0xc0] sm:$0xff]
        %v790 = vld [vmem:[%s5 + $0xc8] sm:$0xff]
        %v791 = vld [vmem:[%s5 + $0xd0] sm:$0xff]
        %v792 = vld [vmem:[%s5 + $0xd8] sm:$0xff]
        %v793 = vld [vmem:[%s5 + $0xe0] sm:$0xff]
        %v794 = vld [vmem:[%s5 + $0xe8] sm:$0xff]
        %v795 = vld [vmem:[%s5 + $0xf0] sm:$0xff]
        %v796 = vld [vmem:[%s5 + $0xf8] sm:$0xff]
        %v798 = vsel %vm434, %v765, 0
        %v801 = vsel %vm434, %v766, 0
        %v804 = vsel %vm434, %v767, 0
        %v807 = vsel %vm434, %v768, 0
        %v810 = vsel %vm434, %v769, 0
        %v813 = vsel %vm434, %v770, 0
        %v816 = vsel %vm434, %v771, 0
        %v819 = vsel %vm434, %v772, 0
        %v822 = vsel %vm434, %v773, 0
        %v825 = vsel %vm434, %v774, 0
        %v828 = vsel %vm434, %v775, 0
        %v831 = vsel %vm434, %v776, 0
        %v834 = vsel %vm434, %v777, 0
        %v837 = vsel %vm434, %v778, 0
        %v840 = vsel %vm434, %v779, 0
        %v843 = vsel %vm434, %v780, 0
        %v846 = vsel %vm434, %v781, 0
        %v849 = vsel %vm434, %v782, 0
        %v852 = vsel %vm434, %v783, 0
        %v855 = vsel %vm434, %v784, 0
        %v858 = vsel %vm434, %v785, 0
        %v861 = vsel %vm434, %v786, 0
        %v864 = vsel %vm434, %v787, 0
        %v867 = vsel %vm434, %v788, 0
        %v870 = vsel %vm434, %v789, 0
        %v873 = vsel %vm434, %v790, 0
        %v876 = vsel %vm434, %v791, 0
        %v879 = vsel %vm434, %v792, 0
        %v882 = vsel %vm434, %v793, 0
        %v885 = vsel %vm434, %v794, 0
        %v888 = vsel %vm434, %v795, 0
        %v891 = vsel %vm434, %v796, 0
        %893 = vmatprep.subr.mxu0 0.0
        %894 = vmatpush1.msra.mxu0 0.0
        %895 = vmatprep.subr.mxu0 0.0
        %896 = vmatpush1.msra.mxu0 0.0
        %897 = vmatprep.subr.mxu0 0.0
        %898 = vmatpush1.msra.mxu0 0.0
        %899 = vmatprep.subr.mxu0 0.0
        %900 = vmatpush1.msra.mxu0 0.0
        %901 = vmatprep.subr.mxu0 0.0
        %902 = vmatpush1.msra.mxu0 0.0
        %903 = vmatprep.subr.mxu0 0.0
        %904 = vmatpush1.msra.mxu0 0.0
        %905 = vmatprep.subr.mxu0 0.0
        %906 = vmatpush1.msra.mxu0 0.0
        %907 = vmatprep.subr.mxu0 0.0
        %908 = vmatpush1.msra.mxu0 0.0
        %909 = vmatprep.subr.mxu0 0.0
        %910 = vmatpush1.msra.mxu0 0.0
        %911 = vmatprep.subr.mxu0 0.0
        %912 = vmatpush1.msra.mxu0 0.0
        %913 = vmatprep.subr.mxu0 0.0
        %914 = vmatpush1.msra.mxu0 0.0
        %915 = vmatprep.subr.mxu0 0.0
        %916 = vmatpush1.msra.mxu0 0.0
        %917 = vmatprep.subr.mxu0 0.0
        %918 = vmatpush1.msra.mxu0 0.0
        %919 = vmatprep.subr.mxu0 0.0
        %920 = vmatpush1.msra.mxu0 0.0
        %921 = vmatprep.subr.mxu0 0.0
        %922 = vmatpush1.msra.mxu0 %v440
        %923 = vmatprep.subr.mxu0 0.0
        %924 = vmatpush1.msra.mxu0 %v431
        %925 = vmatprep.subr.mxu0 0.0
        %926 = vmatpush2.msra.mxu0 0.0
        %927 = vmatprep.subr.mxu0 0.0
        %928 = vmatpush2.msra.mxu0 0.0
        %929 = vmatprep.subr.mxu0 0.0
        %930 = vmatpush2.msra.mxu0 0.0
        %931 = vmatprep.subr.mxu0 0.0
        %932 = vmatpush2.msra.mxu0 0.0
        %933 = vmatprep.subr.mxu0 0.0
        %934 = vmatpush2.msra.mxu0 0.0
        %935 = vmatprep.subr.mxu0 0.0
        %936 = vmatpush2.msra.mxu0 0.0
        %937 = vmatprep.subr.mxu0 0.0
        %938 = vmatpush2.msra.mxu0 0.0
        %939 = vmatprep.subr.mxu0 0.0
        %940 = vmatpush2.msra.mxu0 0.0
        %941 = vmatprep.subr.mxu0 0.0
        %942 = vmatpush2.msra.mxu0 0.0
        %943 = vmatprep.subr.mxu0 0.0
        %944 = vmatpush2.msra.mxu0 0.0
        %945 = vmatprep.subr.mxu0 0.0
        %946 = vmatpush2.msra.mxu0 0.0
        %947 = vmatprep.subr.mxu0 0.0
        %948 = vmatpush2.msra.mxu0 0.0
        %949 = vmatprep.subr.mxu0 0.0
        %950 = vmatpush2.msra.mxu0 0.0
        %951 = vmatprep.subr.mxu0 0.0
        %952 = vmatpush2.msra.mxu0 0.0
        %953 = vmatprep.subr.mxu0 0.0
        %954 = vmatpush2.msra.mxu0 0.0
        %955 = vmatprep.subr.mxu0 0.0
        %956 = vmatpush2.msra.mxu0 0.0
        %957 = vmatprep.mubr.f32.mxu0 0.0
        %958 = vmatmul.mubr.f32.gmra.mxu0 %v798
        %v959 = vpop.f32.mrf.mxu0
        %v960 = vadd.f32 0.0, %v959
        %v961 = vpop.f32.mrf.mxu0
        %962 = vmatprep.mubr.f32.mxu0 0.0
        %963 = vmatmul.mubr.f32.gmra.mxu0 %v801
        %v964 = vpop.f32.mrf.mxu0
        %v965 = vadd.f32 0.0, %v964
        %v966 = vpop.f32.mrf.mxu0
        %967 = vmatprep.mubr.f32.mxu0 0.0
        %968 = vmatmul.mubr.f32.gmra.mxu0 %v804
        %v969 = vpop.f32.mrf.mxu0
        %v970 = vadd.f32 0.0, %v969
        %v971 = vpop.f32.mrf.mxu0
        %972 = vmatprep.mubr.f32.mxu0 0.0
        %973 = vmatmul.mubr.f32.gmra.mxu0 %v807
        %v974 = vpop.f32.mrf.mxu0
        %v975 = vadd.f32 0.0, %v974
        %v976 = vpop.f32.mrf.mxu0
        %977 = vmatprep.mubr.f32.mxu0 0.0
        %978 = vmatmul.mubr.f32.gmra.mxu0 %v810
        %v979 = vpop.f32.mrf.mxu0
        %v980 = vadd.f32 0.0, %v979
        %v981 = vpop.f32.mrf.mxu0
        %982 = vmatprep.mubr.f32.mxu0 0.0
        %983 = vmatmul.mubr.f32.gmra.mxu0 %v813
        %v984 = vpop.f32.mrf.mxu0
        %v985 = vadd.f32 0.0, %v984
        %v986 = vpop.f32.mrf.mxu0
        %987 = vmatprep.mubr.f32.mxu0 0.0
        %988 = vmatmul.mubr.f32.gmra.mxu0 %v816
        %v989 = vpop.f32.mrf.mxu0
        %v990 = vadd.f32 0.0, %v989
        %v991 = vpop.f32.mrf.mxu0
        %992 = vmatprep.mubr.f32.mxu0 0.0
        %993 = vmatmul.mubr.f32.gmra.mxu0 %v819
        %v994 = vpop.f32.mrf.mxu0
        %v995 = vadd.f32 0.0, %v994
        %v996 = vpop.f32.mrf.mxu0
        %997 = vmatprep.mubr.f32.mxu0 0.0
        %998 = vmatmul.mubr.f32.gmra.mxu0 %v822
        %v999 = vpop.f32.mrf.mxu0
        %v1000 = vadd.f32 0.0, %v999
        %v1001 = vpop.f32.mrf.mxu0
        %1002 = vmatprep.mubr.f32.mxu0 0.0
        %1003 = vmatmul.mubr.f32.gmra.mxu0 %v825
        %v1004 = vpop.f32.mrf.mxu0
        %v1005 = vadd.f32 0.0, %v1004
        %v1006 = vpop.f32.mrf.mxu0
        %1007 = vmatprep.mubr.f32.mxu0 0.0
        %1008 = vmatmul.mubr.f32.gmra.mxu0 %v828
        %v1009 = vpop.f32.mrf.mxu0
        %v1010 = vadd.f32 0.0, %v1009
        %v1011 = vpop.f32.mrf.mxu0
        %1012 = vmatprep.mubr.f32.mxu0 0.0
        %1013 = vmatmul.mubr.f32.gmra.mxu0 %v831
        %v1014 = vpop.f32.mrf.mxu0
        %v1015 = vadd.f32 0.0, %v1014
        %v1016 = vpop.f32.mrf.mxu0
        %1017 = vmatprep.mubr.f32.mxu0 0.0
        %1018 = vmatmul.mubr.f32.gmra.mxu0 %v834
        %v1019 = vpop.f32.mrf.mxu0
        %v1020 = vadd.f32 0.0, %v1019
        %v1021 = vpop.f32.mrf.mxu0
        %1022 = vmatprep.mubr.f32.mxu0 0.0
        %1023 = vmatmul.mubr.f32.gmra.mxu0 %v837
        %v1024 = vpop.f32.mrf.mxu0
        %v1025 = vadd.f32 0.0, %v1024
        %v1026 = vpop.f32.mrf.mxu0
        %1027 = vmatprep.mubr.f32.mxu0 0.0
        %1028 = vmatmul.mubr.f32.gmra.mxu0 %v840
        %v1029 = vpop.f32.mrf.mxu0
        %v1030 = vadd.f32 0.0, %v1029
        %v1031 = vpop.f32.mrf.mxu0
        %1032 = vmatprep.mubr.f32.mxu0 0.0
        %1033 = vmatmul.mubr.f32.gmra.mxu0 %v843
        %v1034 = vpop.f32.mrf.mxu0
        %v1035 = vadd.f32 0.0, %v1034
        %v1036 = vpop.f32.mrf.mxu0
        %1037 = vmatprep.mubr.f32.mxu0 0.0
        %1038 = vmatmul.mubr.f32.gmra.mxu0 %v846
        %v1039 = vpop.f32.mrf.mxu0
        %v1040 = vadd.f32 0.0, %v1039
        %v1041 = vpop.f32.mrf.mxu0
        %1042 = vmatprep.mubr.f32.mxu0 0.0
        %1043 = vmatmul.mubr.f32.gmra.mxu0 %v849
        %v1044 = vpop.f32.mrf.mxu0
        %v1045 = vadd.f32 0.0, %v1044
        %v1046 = vpop.f32.mrf.mxu0
        %1047 = vmatprep.mubr.f32.mxu0 0.0
        %1048 = vmatmul.mubr.f32.gmra.mxu0 %v852
        %v1049 = vpop.f32.mrf.mxu0
        %v1050 = vadd.f32 0.0, %v1049
        %v1051 = vpop.f32.mrf.mxu0
        %1052 = vmatprep.mubr.f32.mxu0 0.0
        %1053 = vmatmul.mubr.f32.gmra.mxu0 %v855
        %v1054 = vpop.f32.mrf.mxu0
        %v1055 = vadd.f32 0.0, %v1054
        %v1056 = vpop.f32.mrf.mxu0
        %1057 = vmatprep.mubr.f32.mxu0 0.0
        %1058 = vmatmul.mubr.f32.gmra.mxu0 %v858
        %v1059 = vpop.f32.mrf.mxu0
        %v1060 = vadd.f32 0.0, %v1059
        %v1061 = vpop.f32.mrf.mxu0
        %1062 = vmatprep.mubr.f32.mxu0 0.0
        %1063 = vmatmul.mubr.f32.gmra.mxu0 %v861
        %v1064 = vpop.f32.mrf.mxu0
        %v1065 = vadd.f32 0.0, %v1064
        %v1066 = vpop.f32.mrf.mxu0
        %1067 = vmatprep.mubr.f32.mxu0 0.0
        %1068 = vmatmul.mubr.f32.gmra.mxu0 %v864
        %v1069 = vpop.f32.mrf.mxu0
        %v1070 = vadd.f32 0.0, %v1069
        %v1071 = vpop.f32.mrf.mxu0
        %1072 = vmatprep.mubr.f32.mxu0 0.0
        %1073 = vmatmul.mubr.f32.gmra.mxu0 %v867
        %v1074 = vpop.f32.mrf.mxu0
        %v1075 = vadd.f32 0.0, %v1074
        %v1076 = vpop.f32.mrf.mxu0
        %1077 = vmatprep.mubr.f32.mxu0 0.0
        %1078 = vmatmul.mubr.f32.gmra.mxu0 %v870
        %v1079 = vpop.f32.mrf.mxu0
        %v1080 = vadd.f32 0.0, %v1079
        %v1081 = vpop.f32.mrf.mxu0
        %1082 = vmatprep.mubr.f32.mxu0 0.0
        %1083 = vmatmul.mubr.f32.gmra.mxu0 %v873
        %v1084 = vpop.f32.mrf.mxu0
        %v1085 = vadd.f32 0.0, %v1084
        %v1086 = vpop.f32.mrf.mxu0
        %1087 = vmatprep.mubr.f32.mxu0 0.0
        %1088 = vmatmul.mubr.f32.gmra.mxu0 %v876
        %v1089 = vpop.f32.mrf.mxu0
        %v1090 = vadd.f32 0.0, %v1089
        %v1091 = vpop.f32.mrf.mxu0
        %1092 = vmatprep.mubr.f32.mxu0 0.0
        %1093 = vmatmul.mubr.f32.gmra.mxu0 %v879
        %v1094 = vpop.f32.mrf.mxu0
        %v1095 = vadd.f32 0.0, %v1094
        %v1096 = vpop.f32.mrf.mxu0
        %1097 = vmatprep.mubr.f32.mxu0 0.0
        %1098 = vmatmul.mubr.f32.gmra.mxu0 %v882
        %v1099 = vpop.f32.mrf.mxu0
        %v1100 = vadd.f32 0.0, %v1099
        %v1101 = vpop.f32.mrf.mxu0
        %1102 = vmatprep.mubr.f32.mxu0 0.0
        %1103 = vmatmul.mubr.f32.gmra.mxu0 %v885
        %v1104 = vpop.f32.mrf.mxu0
        %v1105 = vadd.f32 0.0, %v1104
        %v1106 = vpop.f32.mrf.mxu0
        %1107 = vmatprep.mubr.f32.mxu0 0.0
        %1108 = vmatmul.mubr.f32.gmra.mxu0 %v888
        %v1109 = vpop.f32.mrf.mxu0
        %v1110 = vadd.f32 0.0, %v1109
        %v1111 = vpop.f32.mrf.mxu0
        %1112 = vmatprep.mubr.f32.mxu0 0.0
        %1113 = vmatmul.mubr.f32.gmra.mxu0 %v891
        %v1114 = vpop.f32.mrf.mxu0
        %v1115 = vadd.f32 0.0, %v1114
        %v1116 = vpop.f32.mrf.mxu0
        %1117 = vdwg.mxu0
        %v1118 = vlaneseq
        %v1119 = vshrl.u32 %v1118, 7
        %v1120 = vadd.s32 %v1119, 8
        %v1121 = vadd.s32 %v1119, 16
        %v1122 = vadd.s32 %v1119, 24
        %v1123 = vadd.s32 %v1119, 32
        %v1124 = vadd.s32 %v1119, 40
        %v1125 = vadd.s32 %v1119, 48
        %v1126 = vadd.s32 %v1119, 56
        %v1127 = vmax.f32 %v960, %v980
        %v1128 = vmax.f32 %v965, %v985
        %v1129 = vmax.f32 %v970, %v990
        %v1130 = vmax.f32 %v975, %v995
        %v1131 = vmax.f32 %v1127, %v1128
        %v1132 = vmax.f32 %v1129, %v1130
        %v1133 = vmax.f32 %v1131, %v1132
        %v1134 = vrot.slane %v1133, 4
        %v1135 = vmax.f32 %v1133, %v1134
        %v1136 = vrot.slane %v1135, 2
        %v1137 = vmax.f32 %v1135, %v1136
        %v1138 = vrot.slane %v1137, 1
        %v1139 = vmax.f32 %v1137, %v1138
        %vm1140 = vcmp.eq.f32.partialorder %v960, %v1139
        %vm1141 = vcmp.eq.f32.partialorder %v965, %v1139
        %vm1142 = vcmp.eq.f32.partialorder %v970, %v1139
        %vm1143 = vcmp.eq.f32.partialorder %v975, %v1139
        %vm1144 = vcmp.eq.f32.partialorder %v980, %v1139
        %vm1145 = vcmp.eq.f32.partialorder %v985, %v1139
        %vm1146 = vcmp.eq.f32.partialorder %v990, %v1139
        %vm1147 = vcmp.eq.f32.partialorder %v995, %v1139
        %v1148 = vsel %vm1140, %v1119, 64
        %v1149 = vsel %vm1141, %v1120, 64
        %v1150 = vsel %vm1142, %v1121, 64
        %v1151 = vsel %vm1143, %v1122, 64
        %v1152 = vsel %vm1144, %v1123, 64
        %v1153 = vsel %vm1145, %v1124, 64
        %v1154 = vsel %vm1146, %v1125, 64
        %v1155 = vsel %vm1147, %v1126, 64
        %vm1156 = vcmp.lt.s32.totalorder %v1148, %v1152
        %v1157 = vsel %vm1156, %v1148, %v1152
        %vm1158 = vcmp.lt.s32.totalorder %v1149, %v1153
        %v1159 = vsel %vm1158, %v1149, %v1153
        %vm1160 = vcmp.lt.s32.totalorder %v1150, %v1154
        %v1161 = vsel %vm1160, %v1150, %v1154
        %vm1162 = vcmp.lt.s32.totalorder %v1151, %v1155
        %v1163 = vsel %vm1162, %v1151, %v1155
        %vm1164 = vcmp.lt.s32.totalorder %v1157, %v1159
        %v1165 = vsel %vm1164, %v1157, %v1159
        %vm1166 = vcmp.lt.s32.totalorder %v1161, %v1163
        %v1167 = vsel %vm1166, %v1161, %v1163
        %vm1168 = vcmp.lt.s32.totalorder %v1165, %v1167
        %v1169 = vsel %vm1168, %v1165, %v1167
        %v1170 = vrot.slane %v1169, 4
        %vm1171 = vcmp.lt.s32.totalorder %v1169, %v1170
        %v1172 = vsel %vm1171, %v1169, %v1170
        %v1173 = vrot.slane %v1172, 2
        %vm1174 = vcmp.lt.s32.totalorder %v1172, %v1173
        %v1175 = vsel %vm1174, %v1172, %v1173
        %v1176 = vrot.slane %v1175, 1
        %vm1177 = vcmp.lt.s32.totalorder %v1175, %v1176
        %v1178 = vsel %vm1177, %v1175, %v1176
        %vm1179 = vcmp.eq.s32.totalorder %v1119, %v1178
        %vm1180 = vcmp.eq.s32.totalorder %v1120, %v1178
        %vm1181 = vcmp.eq.s32.totalorder %v1121, %v1178
        %vm1182 = vcmp.eq.s32.totalorder %v1122, %v1178
        %vm1183 = vcmp.eq.s32.totalorder %v1123, %v1178
        %vm1184 = vcmp.eq.s32.totalorder %v1124, %v1178
        %vm1185 = vcmp.eq.s32.totalorder %v1125, %v1178
        %vm1186 = vcmp.eq.s32.totalorder %v1126, %v1178
        %v1187 = vlaneseq
        %v1188 = vshrl.u32 %v1187, 7
        %v1189 = vsub.s32 0, %v1188
        %v1190 = vrot.slane %v642, %v1189
        %v1191 = vsel %vm1179, %v1190, 0.0
        %v1192 = vsel %vm1180, %v1190, 0.0
        %v1193 = vsel %vm1181, %v1190, 0.0
        %v1194 = vsel %vm1182, %v1190, 0.0
        %v1195 = vsel %vm1183, %v1190, 0.0
        %v1196 = vsel %vm1184, %v1190, 0.0
        %v1197 = vsel %vm1185, %v1190, 0.0
        %v1198 = vsel %vm1186, %v1190, 0.0
        %v1199 = vadd.f32 %v1139, 0.0
        %vm1200 = vcmp.eq.f32.partialorder %v642, %v650
        %v1201 = vsel %vm1200, %v1178, 0
        %v1202 = vmax.f32 %v1000, %v1020
        %v1203 = vmax.f32 %v1005, %v1025
        %v1204 = vmax.f32 %v1010, %v1030
        %v1205 = vmax.f32 %v1015, %v1035
        %v1206 = vmax.f32 %v1202, %v1203
        %v1207 = vmax.f32 %v1204, %v1205
        %v1208 = vmax.f32 %v1206, %v1207
        %v1209 = vrot.slane %v1208, 4
        %v1210 = vmax.f32 %v1208, %v1209
        %v1211 = vrot.slane %v1210, 2
        %v1212 = vmax.f32 %v1210, %v1211
        %v1213 = vrot.slane %v1212, 1
        %v1214 = vmax.f32 %v1212, %v1213
        %vm1215 = vcmp.eq.f32.partialorder %v1000, %v1214
        %vm1216 = vcmp.eq.f32.partialorder %v1005, %v1214
        %vm1217 = vcmp.eq.f32.partialorder %v1010, %v1214
        %vm1218 = vcmp.eq.f32.partialorder %v1015, %v1214
        %vm1219 = vcmp.eq.f32.partialorder %v1020, %v1214
        %vm1220 = vcmp.eq.f32.partialorder %v1025, %v1214
        %vm1221 = vcmp.eq.f32.partialorder %v1030, %v1214
        %vm1222 = vcmp.eq.f32.partialorder %v1035, %v1214
        %v1223 = vsel %vm1215, %v1119, 64
        %v1224 = vsel %vm1216, %v1120, 64
        %v1225 = vsel %vm1217, %v1121, 64
        %v1226 = vsel %vm1218, %v1122, 64
        %v1227 = vsel %vm1219, %v1123, 64
        %v1228 = vsel %vm1220, %v1124, 64
        %v1229 = vsel %vm1221, %v1125, 64
        %v1230 = vsel %vm1222, %v1126, 64
        %vm1231 = vcmp.lt.s32.totalorder %v1223, %v1227
        %v1232 = vsel %vm1231, %v1223, %v1227
        %vm1233 = vcmp.lt.s32.totalorder %v1224, %v1228
        %v1234 = vsel %vm1233, %v1224, %v1228
        %vm1235 = vcmp.lt.s32.totalorder %v1225, %v1229
        %v1236 = vsel %vm1235, %v1225, %v1229
        %vm1237 = vcmp.lt.s32.totalorder %v1226, %v1230
        %v1238 = vsel %vm1237, %v1226, %v1230
        %vm1239 = vcmp.lt.s32.totalorder %v1232, %v1234
        %v1240 = vsel %vm1239, %v1232, %v1234
        %vm1241 = vcmp.lt.s32.totalorder %v1236, %v1238
        %v1242 = vsel %vm1241, %v1236, %v1238
        %vm1243 = vcmp.lt.s32.totalorder %v1240, %v1242
        %v1244 = vsel %vm1243, %v1240, %v1242
        %v1245 = vrot.slane %v1244, 4
        %vm1246 = vcmp.lt.s32.totalorder %v1244, %v1245
        %v1247 = vsel %vm1246, %v1244, %v1245
        %v1248 = vrot.slane %v1247, 2
        %vm1249 = vcmp.lt.s32.totalorder %v1247, %v1248
        %v1250 = vsel %vm1249, %v1247, %v1248
        %v1251 = vrot.slane %v1250, 1
        %vm1252 = vcmp.lt.s32.totalorder %v1250, %v1251
        %v1253 = vsel %vm1252, %v1250, %v1251
        %vm1254 = vcmp.eq.s32.totalorder %v1119, %v1253
        %vm1255 = vcmp.eq.s32.totalorder %v1120, %v1253
        %vm1256 = vcmp.eq.s32.totalorder %v1121, %v1253
        %vm1257 = vcmp.eq.s32.totalorder %v1122, %v1253
        %vm1258 = vcmp.eq.s32.totalorder %v1123, %v1253
        %vm1259 = vcmp.eq.s32.totalorder %v1124, %v1253
        %vm1260 = vcmp.eq.s32.totalorder %v1125, %v1253
        %vm1261 = vcmp.eq.s32.totalorder %v1126, %v1253
        %v1262 = vlaneseq
        %v1263 = vshrl.u32 %v1262, 7
        %v1264 = vsub.s32 1, %v1263
        %v1265 = vrot.slane %v642, %v1264
        %v1266 = vsel %vm1254, %v1265, 0.0
        %v1267 = vsel %vm1255, %v1265, 0.0
        %v1268 = vsel %vm1256, %v1265, 0.0
        %v1269 = vsel %vm1257, %v1265, 0.0
        %v1270 = vsel %vm1258, %v1265, 0.0
        %v1271 = vsel %vm1259, %v1265, 0.0
        %v1272 = vsel %vm1260, %v1265, 0.0
        %v1273 = vsel %vm1261, %v1265, 0.0
        %v1274 = vadd.f32 %v1199, %v1214
        %v1275 = vrot.slane %v1201, 7
        %v1276 = vsel %vm1200, %v1253, %v1275
        %v1277 = vmax.f32 %v1040, %v1060
        %v1278 = vmax.f32 %v1045, %v1065
        %v1279 = vmax.f32 %v1050, %v1070
        %v1280 = vmax.f32 %v1055, %v1075
        %v1281 = vmax.f32 %v1277, %v1278
        %v1282 = vmax.f32 %v1279, %v1280
        %v1283 = vmax.f32 %v1281, %v1282
        %v1284 = vrot.slane %v1283, 4
        %v1285 = vmax.f32 %v1283, %v1284
        %v1286 = vrot.slane %v1285, 2
        %v1287 = vmax.f32 %v1285, %v1286
        %v1288 = vrot.slane %v1287, 1
        %v1289 = vmax.f32 %v1287, %v1288
        %vm1290 = vcmp.eq.f32.partialorder %v1040, %v1289
        %vm1291 = vcmp.eq.f32.partialorder %v1045, %v1289
        %vm1292 = vcmp.eq.f32.partialorder %v1050, %v1289
        %vm1293 = vcmp.eq.f32.partialorder %v1055, %v1289
        %vm1294 = vcmp.eq.f32.partialorder %v1060, %v1289
        %vm1295 = vcmp.eq.f32.partialorder %v1065, %v1289
        %vm1296 = vcmp.eq.f32.partialorder %v1070, %v1289
        %vm1297 = vcmp.eq.f32.partialorder %v1075, %v1289
        %v1298 = vsel %vm1290, %v1119, 64
        %v1299 = vsel %vm1291, %v1120, 64
        %v1300 = vsel %vm1292, %v1121, 64
        %v1301 = vsel %vm1293, %v1122, 64
        %v1302 = vsel %vm1294, %v1123, 64
        %v1303 = vsel %vm1295, %v1124, 64
        %v1304 = vsel %vm1296, %v1125, 64
        %v1305 = vsel %vm1297, %v1126, 64
        %vm1306 = vcmp.lt.s32.totalorder %v1298, %v1302
        %v1307 = vsel %vm1306, %v1298, %v1302
        %vm1308 = vcmp.lt.s32.totalorder %v1299, %v1303
        %v1309 = vsel %vm1308, %v1299, %v1303
        %vm1310 = vcmp.lt.s32.totalorder %v1300, %v1304
        %v1311 = vsel %vm1310, %v1300, %v1304
        %vm1312 = vcmp.lt.s32.totalorder %v1301, %v1305
        %v1313 = vsel %vm1312, %v1301, %v1305
        %vm1314 = vcmp.lt.s32.totalorder %v1307, %v1309
        %v1315 = vsel %vm1314, %v1307, %v1309
        %vm1316 = vcmp.lt.s32.totalorder %v1311, %v1313
        %v1317 = vsel %vm1316, %v1311, %v1313
        %vm1318 = vcmp.lt.s32.totalorder %v1315, %v1317
        %v1319 = vsel %vm1318, %v1315, %v1317
        %v1320 = vrot.slane %v1319, 4
        %vm1321 = vcmp.lt.s32.totalorder %v1319, %v1320
        %v1322 = vsel %vm1321, %v1319, %v1320
        %v1323 = vrot.slane %v1322, 2
        %vm1324 = vcmp.lt.s32.totalorder %v1322, %v1323
        %v1325 = vsel %vm1324, %v1322, %v1323
        %v1326 = vrot.slane %v1325, 1
        %vm1327 = vcmp.lt.s32.totalorder %v1325, %v1326
        %v1328 = vsel %vm1327, %v1325, %v1326
        %vm1329 = vcmp.eq.s32.totalorder %v1119, %v1328
        %vm1330 = vcmp.eq.s32.totalorder %v1120, %v1328
        %vm1331 = vcmp.eq.s32.totalorder %v1121, %v1328
        %vm1332 = vcmp.eq.s32.totalorder %v1122, %v1328
        %vm1333 = vcmp.eq.s32.totalorder %v1123, %v1328
        %vm1334 = vcmp.eq.s32.totalorder %v1124, %v1328
        %vm1335 = vcmp.eq.s32.totalorder %v1125, %v1328
        %vm1336 = vcmp.eq.s32.totalorder %v1126, %v1328
        %v1337 = vlaneseq
        %v1338 = vshrl.u32 %v1337, 7
        %v1339 = vsub.s32 2, %v1338
        %v1340 = vrot.slane %v642, %v1339
        %v1341 = vsel %vm1329, %v1340, 0.0
        %v1342 = vsel %vm1330, %v1340, 0.0
        %v1343 = vsel %vm1331, %v1340, 0.0
        %v1344 = vsel %vm1332, %v1340, 0.0
        %v1345 = vsel %vm1333, %v1340, 0.0
        %v1346 = vsel %vm1334, %v1340, 0.0
        %v1347 = vsel %vm1335, %v1340, 0.0
        %v1348 = vsel %vm1336, %v1340, 0.0
        %v1349 = vadd.f32 %v1274, %v1289
        %v1350 = vrot.slane %v1276, 7
        %v1351 = vsel %vm1200, %v1328, %v1350
        %v1352 = vmax.f32 %v1080, %v1100
        %v1353 = vmax.f32 %v1085, %v1105
        %v1354 = vmax.f32 %v1090, %v1110
        %v1355 = vmax.f32 %v1095, %v1115
        %v1356 = vmax.f32 %v1352, %v1353
        %v1357 = vmax.f32 %v1354, %v1355
        %v1358 = vmax.f32 %v1356, %v1357
        %v1359 = vrot.slane %v1358, 4
        %v1360 = vmax.f32 %v1358, %v1359
        %v1361 = vrot.slane %v1360, 2
        %v1362 = vmax.f32 %v1360, %v1361
        %v1363 = vrot.slane %v1362, 1
        %v1364 = vmax.f32 %v1362, %v1363
        %vm1365 = vcmp.eq.f32.partialorder %v1080, %v1364
        %vm1366 = vcmp.eq.f32.partialorder %v1085, %v1364
        %vm1367 = vcmp.eq.f32.partialorder %v1090, %v1364
        %vm1368 = vcmp.eq.f32.partialorder %v1095, %v1364
        %vm1369 = vcmp.eq.f32.partialorder %v1100, %v1364
        %vm1370 = vcmp.eq.f32.partialorder %v1105, %v1364
        %vm1371 = vcmp.eq.f32.partialorder %v1110, %v1364
        %vm1372 = vcmp.eq.f32.partialorder %v1115, %v1364
        %v1373 = vsel %vm1365, %v1119, 64
        %v1374 = vsel %vm1366, %v1120, 64
        %v1375 = vsel %vm1367, %v1121, 64
        %v1376 = vsel %vm1368, %v1122, 64
        %v1377 = vsel %vm1369, %v1123, 64
        %v1378 = vsel %vm1370, %v1124, 64
        %v1379 = vsel %vm1371, %v1125, 64
        %v1380 = vsel %vm1372, %v1126, 64
        %vm1381 = vcmp.lt.s32.totalorder %v1373, %v1377
        %v1382 = vsel %vm1381, %v1373, %v1377
        %vm1383 = vcmp.lt.s32.totalorder %v1374, %v1378
        %v1384 = vsel %vm1383, %v1374, %v1378
        %vm1385 = vcmp.lt.s32.totalorder %v1375, %v1379
        %v1386 = vsel %vm1385, %v1375, %v1379
        %vm1387 = vcmp.lt.s32.totalorder %v1376, %v1380
        %v1388 = vsel %vm1387, %v1376, %v1380
        %vm1389 = vcmp.lt.s32.totalorder %v1382, %v1384
        %v1390 = vsel %vm1389, %v1382, %v1384
        %vm1391 = vcmp.lt.s32.totalorder %v1386, %v1388
        %v1392 = vsel %vm1391, %v1386, %v1388
        %vm1393 = vcmp.lt.s32.totalorder %v1390, %v1392
        %v1394 = vsel %vm1393, %v1390, %v1392
        %v1395 = vrot.slane %v1394, 4
        %vm1396 = vcmp.lt.s32.totalorder %v1394, %v1395
        %v1397 = vsel %vm1396, %v1394, %v1395
        %v1398 = vrot.slane %v1397, 2
        %vm1399 = vcmp.lt.s32.totalorder %v1397, %v1398
        %v1400 = vsel %vm1399, %v1397, %v1398
        %v1401 = vrot.slane %v1400, 1
        %vm1402 = vcmp.lt.s32.totalorder %v1400, %v1401
        %v1403 = vsel %vm1402, %v1400, %v1401
        %vm1404 = vcmp.eq.s32.totalorder %v1119, %v1403
        %vm1405 = vcmp.eq.s32.totalorder %v1120, %v1403
        %vm1406 = vcmp.eq.s32.totalorder %v1121, %v1403
        %vm1407 = vcmp.eq.s32.totalorder %v1122, %v1403
        %vm1408 = vcmp.eq.s32.totalorder %v1123, %v1403
        %vm1409 = vcmp.eq.s32.totalorder %v1124, %v1403
        %vm1410 = vcmp.eq.s32.totalorder %v1125, %v1403
        %vm1411 = vcmp.eq.s32.totalorder %v1126, %v1403
        %v1412 = vlaneseq
        %v1413 = vshrl.u32 %v1412, 7
        %v1414 = vsub.s32 3, %v1413
        %v1415 = vrot.slane %v642, %v1414
        %v1416 = vsel %vm1404, %v1415, 0.0
        %v1417 = vsel %vm1405, %v1415, 0.0
        %v1418 = vsel %vm1406, %v1415, 0.0
        %v1419 = vsel %vm1407, %v1415, 0.0
        %v1420 = vsel %vm1408, %v1415, 0.0
        %v1421 = vsel %vm1409, %v1415, 0.0
        %v1422 = vsel %vm1410, %v1415, 0.0
        %v1423 = vsel %vm1411, %v1415, 0.0
        %v1424 = vadd.f32 %v1349, %v1364
        %v1425 = vrot.slane %v1351, 7
        %v1426 = vsel %vm1200, %v1403, %v1425
        %v1427 = vld [vmem:[%s6] sm:$0xff]
        %v1428 = vld [vmem:[%s6 + $0x8] sm:$0xff]
        %v1429 = vld [vmem:[%s6 + $0x10] sm:$0xff]
        %v1430 = vld [vmem:[%s6 + $0x18] sm:$0xff]
        %v1431 = vld [vmem:[%s6 + $0x20] sm:$0xff]
        %v1432 = vld [vmem:[%s6 + $0x28] sm:$0xff]
        %v1433 = vld [vmem:[%s6 + $0x30] sm:$0xff]
        %v1434 = vld [vmem:[%s6 + $0x38] sm:$0xff]
        %1435 = vmatprep.subr.mxu0 0.0
        %1436 = vmatpush1.msra.mxu0 %v1273
        %1437 = vmatprep.subr.mxu0 0.0
        %1438 = vmatpush1.msra.mxu0 %v1272
        %1439 = vmatprep.subr.mxu0 0.0
        %1440 = vmatpush1.msra.mxu0 %v1271
        %1441 = vmatprep.subr.mxu0 0.0
        %1442 = vmatpush1.msra.mxu0 %v1270
        %1443 = vmatprep.subr.mxu0 0.0
        %1444 = vmatpush1.msra.mxu0 %v1269
        %1445 = vmatprep.subr.mxu0 0.0
        %1446 = vmatpush1.msra.mxu0 %v1268
        %1447 = vmatprep.subr.mxu0 0.0
        %1448 = vmatpush1.msra.mxu0 %v1267
        %1449 = vmatprep.subr.mxu0 0.0
        %1450 = vmatpush1.msra.mxu0 %v1266
        %1451 = vmatprep.subr.mxu0 0.0
        %1452 = vmatpush1.msra.mxu0 %v1198
        %1453 = vmatprep.subr.mxu0 0.0
        %1454 = vmatpush1.msra.mxu0 %v1197
        %1455 = vmatprep.subr.mxu0 0.0
        %1456 = vmatpush1.msra.mxu0 %v1196
        %1457 = vmatprep.subr.mxu0 0.0
        %1458 = vmatpush1.msra.mxu0 %v1195
        %1459 = vmatprep.subr.mxu0 0.0
        %1460 = vmatpush1.msra.mxu0 %v1194
        %1461 = vmatprep.subr.mxu0 0.0
        %1462 = vmatpush1.msra.mxu0 %v1193
        %1463 = vmatprep.subr.mxu0 0.0
        %1464 = vmatpush1.msra.mxu0 %v1192
        %1465 = vmatprep.subr.mxu0 0.0
        %1466 = vmatpush1.msra.mxu0 %v1191
        %1467 = vmatprep.subr.mxu0 0.0
        %1468 = vmatpush2.msra.mxu0 %v1423
        %1469 = vmatprep.subr.mxu0 0.0
        %1470 = vmatpush2.msra.mxu0 %v1422
        %1471 = vmatprep.subr.mxu0 0.0
        %1472 = vmatpush2.msra.mxu0 %v1421
        %1473 = vmatprep.subr.mxu0 0.0
        %1474 = vmatpush2.msra.mxu0 %v1420
        %1475 = vmatprep.subr.mxu0 0.0
        %1476 = vmatpush2.msra.mxu0 %v1419
        %1477 = vmatprep.subr.mxu0 0.0
        %1478 = vmatpush2.msra.mxu0 %v1418
        %1479 = vmatprep.subr.mxu0 0.0
        %1480 = vmatpush2.msra.mxu0 %v1417
        %1481 = vmatprep.subr.mxu0 0.0
        %1482 = vmatpush2.msra.mxu0 %v1416
        %1483 = vmatprep.subr.mxu0 0.0
        %1484 = vmatpush2.msra.mxu0 %v1348
        %1485 = vmatprep.subr.mxu0 0.0
        %1486 = vmatpush2.msra.mxu0 %v1347
        %1487 = vmatprep.subr.mxu0 0.0
        %1488 = vmatpush2.msra.mxu0 %v1346
        %1489 = vmatprep.subr.mxu0 0.0
        %1490 = vmatpush2.msra.mxu0 %v1345
        %1491 = vmatprep.subr.mxu0 0.0
        %1492 = vmatpush2.msra.mxu0 %v1344
        %1493 = vmatprep.subr.mxu0 0.0
        %1494 = vmatpush2.msra.mxu0 %v1343
        %1495 = vmatprep.subr.mxu0 0.0
        %1496 = vmatpush2.msra.mxu0 %v1342
        %1497 = vmatprep.subr.mxu0 0.0
        %1498 = vmatpush2.msra.mxu0 %v1341
        %1499 = vmatprep.mubr.f32.mxu0 %v1428
        %1500 = vmatmul.mubr.f32.gmra.mxu0 %v1427
        %v1501 = vpop.f32.mrf.mxu0
        %v1502 = vadd.f32 0.0, %v1501
        %v1503 = vpop.f32.mrf.mxu0
        %1504 = vmatprep.mubr.f32.mxu0 %v1430
        %1505 = vmatmul.mubr.f32.gmra.mxu0 %v1429
        %v1506 = vpop.f32.mrf.mxu0
        %v1507 = vadd.f32 0.0, %v1506
        %v1508 = vpop.f32.mrf.mxu0
        %1509 = vmatprep.mubr.f32.mxu0 %v1432
        %1510 = vmatmul.mubr.f32.gmra.mxu0 %v1431
        %v1511 = vpop.f32.mrf.mxu0
        %v1512 = vadd.f32 0.0, %v1511
        %v1513 = vpop.f32.mrf.mxu0
        %1514 = vmatprep.mubr.f32.mxu0 %v1434
        %1515 = vmatmul.mubr.f32.gmra.mxu0 %v1433
        %v1516 = vpop.f32.mrf.mxu0
        %v1517 = vadd.f32 0.0, %v1516
        %v1518 = vpop.f32.mrf.mxu0
        %1519 = vdwg.mxu0
        %1520 = vst [vmem:[%s424] sm:$0xff] %v1502
        %1521 = vst [vmem:[%s424 + $0x8] sm:$0xff] %v1507
        %1522 = vst [vmem:[%s424 + $0x10] sm:$0xff] %v1512
        %1523 = vst [vmem:[%s424 + $0x18] sm:$0xff] %v1517
        %1524 = vst [vmem:[%s393 - $0x3] sm:$0x8] %v1426
        %v1525 = vlaneseq
        %v1526 = vand.u32 %v1525, 127
        %s1527 = smul.u32 %s33, 128
        %v1528 = vstv %s1527
        %v1529 = vadd.s32 %v1526, %v1528
        %vm1530 = vcmp.lt.s32.totalorder %v1529, 16
        %v1531 = vmul.f32 %v764, 4.0
        %v1532 = vsub.f32 %v1531, %v1424
        %v1533 = vsel %vm1530, %v1532, 0.0
        %1534 = vadd.xlane.f32.xlu0 %v1533
        %v1535 = vpop.xlane.xlu0 %1534
        %1536 = vst [vmem:[%s430] sm:$0x1] %v1535
        %p1537 = scmp.lt.s32.totalorder %s32, 1
        %s1538 = scalar_select %p1537, %s32, 1
        %p1539 = scmp.lt.s32.totalorder %s33, 0
        %s1540 = scalar_select %p1539, %s33, 0
        %s1541 = smul.addr %s1538, 4
        %s1542 = sadd.s32 %s1540, %s1541
        %s1543 = smul.addr %s1542, 8
        %s1544 = scalar_lea.vmem %s7, %s1543
        %s1545 = sand.u32 %s232, 1
        %s1546 = scalar_lea.sflag [#allocation3], %s1545
        %s1547 = sand.u32 %s232, 1
        %s1548 = scalar_lea.vmem [#allocation2], %s1547
        %s1549 = sand.u32 %s260, 1
        %s1550 = scalar_lea.sflag [#allocation5], %s1549
        %s1551 = sand.u32 %s260, 1
        %s1552 = smul.addr %s1551, 4
        %s1553 = scalar_lea.vmem [#allocation4], %s1552
        %p1554 = scmp.lt.s32.totalorder %s32, 1
        %s1555 = scalar_select %p1554, %s32, 1
        %p1556 = scmp.lt.s32.totalorder %s33, 0
        %s1557 = scalar_select %p1556, %s33, 0
        %s1558 = sadd.s32 %s1557, %s1555
        %s1559 = scalar_lea.vmem %s10, %s1558
        // Predicated region
        $region49: #{music_vq_forward.1} parent=47 // pred_check
          %p1560 = pneg %p214
        $region50: #{music_vq_forward.1} parent=47 // pred_check_branch
          %1562 = sbr.rel (%p1560) target = $region52
        $region51: #{music_vq_forward.1} parent=47 // pred_region
          _
        $region52: #{music_vq_forward.1} parent=47 // pred_fallthru
          _
        // Predicated region
        $region53: #{music_vq_forward.1} parent=47 // pred_check
          %p1563 = pneg %p242
        $region54: #{music_vq_forward.1} parent=47 // pred_check_branch
          %1565 = sbr.rel (%p1563) target = $region56
        $region55: #{music_vq_forward.1} parent=47 // pred_region
          %s1567 = ssub.s32 16, 16
          %1568 = vsyncadd %s1546, %s1567
          %s1569 = sadd.s32 %s33, %s32
          %s1570 = smul.addr %s1569, 16
          %s1571 = scalar_lea.hbm %s8, %s1570
          %s1573 = sshll.u32 %s1548, 4
          %s1574 = int_to_ptr.vmem [resolvable:$true] %s1573
          %1576 = dma.vmem_to_hbm [thread:$0]  %s1574, 16, %s1571, %s1546
        $region56: #{music_vq_forward.1} parent=47 // pred_fallthru
          _
        // Predicated region
        $region57: #{music_vq_forward.1} parent=47 // pred_check
          %p1577 = pneg %p270
        $region58: #{music_vq_forward.1} parent=47 // pred_check_branch
          %1579 = sbr.rel (%p1577) target = $region60
        $region59: #{music_vq_forward.1} parent=47 // pred_region
          %s1581 = ssub.s32 64, 64
          %1582 = vsyncadd %s1550, %s1581
          %s1583 = sadd.s32 %s33, %s32
          %s1584 = smul.addr %s1583, 64
          %s1585 = scalar_lea.hbm %s9, %s1584
          %s1587 = sshll.u32 %s1553, 4
          %s1588 = int_to_ptr.vmem [resolvable:$true] %s1587
          %1590 = dma.vmem_to_hbm [thread:$0]  %s1588, 64, %s1585, %s1550
        $region60: #{music_vq_forward.1} parent=47 // pred_fallthru
          _
        // Predicated region
        $region61: #{music_vq_forward.1} parent=47 // pred_check
          %p1591 = pneg %p298
        $region62: #{music_vq_forward.1} parent=47 // pred_check_branch
          %1593 = sbr.rel (%p1591) target = $region64
        $region63: #{music_vq_forward.1} parent=47 // pred_region
          _
        $region64: #{music_vq_forward.1} parent=47 // pred_fallthru
          _
      $region48: #{music_vq_forward.1} parent=5 // pred_fallthru
        _
      %p1594 = scmp.le.s32.totalorder 2, %s23
      // Predicated region
      $region65: #{music_vq_forward.1} parent=5 // pred_check
        %p1595 = pneg %p1594
      $region66: #{music_vq_forward.1} parent=5 // pred_check_branch
        %1597 = sbr.rel (%p1595) target = $region68
      $region67: #{music_vq_forward.1} parent=5 // pred_region
        %s1598 = ssub.s32 %s23, 2
        // Predicated region
        $region69: #{music_vq_forward.1} parent=67 // pred_check
          %p1599 = pneg %p220
        $region70: #{music_vq_forward.1} parent=67 // pred_check_branch
          %1601 = sbr.rel (%p1599) target = $region72
        $region71: #{music_vq_forward.1} parent=67 // pred_region
          %p1602 = scmp.lt.s32.totalorder %s34, 1
          %s1603 = scalar_select %p1602, %s34, 1
          %p1604 = scmp.lt.s32.totalorder %s35, 0
          %s1605 = scalar_select %p1604, %s35, 0
          %s1606 = smul.addr %s1603, 4
          %s1607 = sadd.s32 %s1605, %s1606
          %s1608 = smul.addr %s1607, 8
          %s1609 = scalar_lea.vmem %s7, %s1608
        $region72: #{music_vq_forward.1} parent=67 // pred_fallthru
          _
        // Predicated region
        $region73: #{music_vq_forward.1} parent=67 // pred_check
          %p1610 = pneg %p248
        $region74: #{music_vq_forward.1} parent=67 // pred_check_branch
          %1612 = sbr.rel (%p1610) target = $region76
        $region75: #{music_vq_forward.1} parent=67 // pred_region
          %s1613 = sand.u32 %s233, 1
          %s1614 = scalar_lea.sflag [#allocation3], %s1613
          %s1615 = sand.u32 %s233, 1
          %s1616 = scalar_lea.vmem [#allocation2], %s1615
          %1617 = dma.done %s1614, 16
        $region76: #{music_vq_forward.1} parent=67 // pred_fallthru
          _
        // Predicated region
        $region77: #{music_vq_forward.1} parent=67 // pred_check
          %p1618 = pneg %p276
        $region78: #{music_vq_forward.1} parent=67 // pred_check_branch
          %1620 = sbr.rel (%p1618) target = $region80
        $region79: #{music_vq_forward.1} parent=67 // pred_region
          %s1621 = sand.u32 %s261, 1
          %s1622 = scalar_lea.sflag [#allocation5], %s1621
          %s1623 = sand.u32 %s261, 1
          %s1624 = smul.addr %s1623, 4
          %s1625 = scalar_lea.vmem [#allocation4], %s1624
          %1626 = dma.done %s1622, 64
        $region80: #{music_vq_forward.1} parent=67 // pred_fallthru
          _
        // Predicated region
        $region81: #{music_vq_forward.1} parent=67 // pred_check
          %p1627 = pneg %p304
        $region82: #{music_vq_forward.1} parent=67 // pred_check_branch
          %1629 = sbr.rel (%p1627) target = $region84
        $region83: #{music_vq_forward.1} parent=67 // pred_region
          %p1630 = scmp.lt.s32.totalorder %s34, 1
          %s1631 = scalar_select %p1630, %s34, 1
          %p1632 = scmp.lt.s32.totalorder %s35, 0
          %s1633 = scalar_select %p1632, %s35, 0
          %s1634 = sadd.s32 %s1633, %s1631
          %s1635 = scalar_lea.vmem %s10, %s1634
        $region84: #{music_vq_forward.1} parent=67 // pred_fallthru
          _
      $region68: #{music_vq_forward.1} parent=5 // pred_fallthru
        _
    $region6: #{music_vq_forward.1} parent=1 // loop_footer
      %s27 = sadd.s32 1, %s23
    $region7: #{music_vq_forward.1} parent=1 // loop_footer_branch
      %22 = sbr.rel target = $region3
    $region8: #{music_vq_forward.1} parent=1 // loop_exit
      _
    %1636 = vsyncpa [#allocation3], 1
    %s1637 = scalar_lea.sflag [#allocation3], 1
    %1638 = vsyncpa %s1637, 1
    %1639 = vsyncpa [#allocation5], 1
    %s1640 = scalar_lea.sflag [#allocation5], 1
    %1641 = vsyncpa %s1640, 1

</llo_original>
